<compile_context>
chip_gen: v7x
topology: tpu7x:2x2x1
jax: 0.10.0
libtpu: 0.0.40
codegen_flags: <defaults>
</compile_context>

<pallas_src>
import functools

import jax
import jax.numpy as jnp
import numpy as np
from jax.experimental import pallas as pl
from jax.experimental.pallas import tpu as pltpu

EPS = 1e-6


# ------------------------------ fused kernel -------------------------------

def _fused_cross_attn_kernel(x_ref, ctx_ref,
                             wq_ref, bq_ref, gq_ref,
                             wkv_ref, bkv_ref, gk_ref,
                             wo_ref, bo_ref,
                             o_ref,
                             k_sc, v_sc,
                             *, num_heads, head_dim):
    """One (batch, query-tile) step of the fused cross-attention."""
    inner = num_heads * head_dim

    # --- key/value projection + key RMSNorm: computed once per batch element
    #     (first query tile), cached in VMEM scratch, reused by every query tile.
    @pl.when(pl.program_id(1) == 0)
    def _():
        ctx = ctx_ref[0]                                              # (M, C_ctx)
        kv = (jnp.dot(ctx, wkv_ref[...], preferred_element_type=jnp.float32)
              + bkv_ref[...])
        k = kv[:, :inner]
        v = kv[:, inner:]
        k_sc[...] = (k * jax.lax.rsqrt(jnp.mean(k * k, axis=-1, keepdims=True)
                                       + EPS) * gk_ref[...])
        v_sc[...] = v

    # --- query projection + RMSNorm (per-head attention scale pre-folded into gq).
    x = x_ref[0]                                                      # (tn, C)
    q = jnp.dot(x, wq_ref[...], preferred_element_type=jnp.float32) + bq_ref[...]
    q = q * jax.lax.rsqrt(jnp.mean(q * q, axis=-1, keepdims=True) + EPS) * gq_ref[...]

    k = k_sc[...]                                                     # (M, inner)
    v = v_sc[...]                                                     # (M, inner)

    # TODO(synk): the reference forward hardcodes theta = theta_context = 0, which
    # makes apply_rotary_emb_ the identity; non-zero rotary angles are not wired in.

    # --- per-head attention (SDPA scale = 1.0 since qk_norm=True). Heads are
    #     indexed through the channel dim with static slices (no transposes);
    #     head outputs are concatenated so the output projection is one
    #     full-contraction MXU matmul.
    heads = []
    for h in range(num_heads):
        lo = h * head_dim
        qh = q[:, lo:lo + head_dim]                                   # (tn, Dh)
        kh = k[:, lo:lo + head_dim]                                   # (M, Dh)
        vh = v[:, lo:lo + head_dim]                                   # (M, Dh)
        s = jax.lax.dot_general(qh, kh, (((1,), (1,)), ((), ())),
                                preferred_element_type=jnp.float32)   # (tn, M)
        s = s - jnp.max(s, axis=-1, keepdims=True)
        p = jnp.exp(s)
        inv = 1.0 / jnp.sum(p, axis=-1, keepdims=True)                # (tn, 1)
        oh = jnp.dot(p, vh, preferred_element_type=jnp.float32) * inv
        heads.append(oh)
    attn = jnp.concatenate(heads, axis=-1)                            # (tn, inner)

    out = (jnp.dot(attn, wo_ref[...], preferred_element_type=jnp.float32)
           + bo_ref[...])
    o_ref[0] = out.astype(o_ref.dtype)


# ------------------------------ module forward ------------------------------

def rope_cross_attention(x, context, params, num_heads,
                         pos=None, context_pos=None, q_tile=None):
    """RoPECrossAttention.forward(x, context, pos, context_pos) with qk_norm=True,
    dropout=0.0 and theta = theta_context = 0 (identity rotation), per the spec."""
    del pos, context_pos  # theta hardcoded to 0 in the reference forward
    context = x if context is None else context
    B, N, C = x.shape
    M, Cc = context.shape[1], context.shape[2]
    inner = params["wq"].shape[1]
    Dh = inner // num_heads

    # Query-token tiling: bound VMEM for large N. Tile must divide N and be a
    # multiple of 8 (sublane) unless it equals the full extent.
    if q_tile is None:
        q_tile = N if N <= 512 else 512
    if N % q_tile != 0 or (q_tile != N and q_tile % 8 != 0):
        q_tile = N
    n_tiles = N // q_tile

    # Weight-only preprocessing (done once per parameter set, not per token):
    #  * fold the per-head attention scale into the query RMSNorm gain
    #  * concatenate key/value projections into one (C_ctx, 2*inner) weight.
    scale_ch = jnp.repeat(params["scale"].reshape(-1).astype(jnp.float32), Dh)
    gq_eff = (params["gq"] * scale_ch).reshape(1, inner)
    gk = params["gk"].reshape(1, inner)
    wkv = jnp.concatenate([params["wk"], params["wv"]], axis=1)        # (Cc, 2*inner)
    bkv = jnp.concatenate([params["bk"], params["bv"]]).reshape(1, 2 * inner)
    bq = params["bq"].reshape(1, inner)
    bo = params["bo"].reshape(1, C)

    kernel = functools.partial(_fused_cross_attn_kernel,
                               num_heads=num_heads, head_dim=Dh)
    return pl.pallas_call(
        kernel,
        out_shape=jax.ShapeDtypeStruct((B, N, C), x.dtype),
        grid=(B, n_tiles),
        in_specs=[
            pl.BlockSpec((1, q_tile, C), lambda b, j: (b, j, 0)),      # x tile
            pl.BlockSpec((1, M, Cc), lambda b, j: (b, 0, 0)),          # context
            pl.BlockSpec((C, inner), lambda b, j: (0, 0)),             # Wq
            pl.BlockSpec((1, inner), lambda b, j: (0, 0)),             # bq
            pl.BlockSpec((1, inner), lambda b, j: (0, 0)),             # gq * scale
            pl.BlockSpec((Cc, 2 * inner), lambda b, j: (0, 0)),        # [Wk | Wv]
            pl.BlockSpec((1, 2 * inner), lambda b, j: (0, 0)),         # [bk | bv]
            pl.BlockSpec((1, inner), lambda b, j: (0, 0)),             # gk
            pl.BlockSpec((inner, C), lambda b, j: (0, 0)),             # Wo
            pl.BlockSpec((1, C), lambda b, j: (0, 0)),                 # bo
        ],
        out_specs=pl.BlockSpec((1, q_tile, C), lambda b, j: (b, j, 0)),
        scratch_shapes=[
            pltpu.VMEM((M, inner), jnp.float32),                       # normalized k
            pltpu.VMEM((M, inner), jnp.float32),                       # v
        ],
        compiler_params=pltpu.CompilerParams(
            dimension_semantics=("parallel", "arbitrary")),
    )(x, context, params["wq"], bq, gq_eff, wkv, bkv, gk, params["wo"], bo)


# ------------------------------ JAX reference -------------------------------

def reference(x, context, params, num_heads):
    def rms(t, g):
        return t * jax.lax.rsqrt(jnp.mean(t * t, -1, keepdims=True) + EPS) * g

    q = x @ params["wq"] + params["bq"]
    k = context @ params["wk"] + params["bk"]
    v = context @ params["wv"] + params["bv"]
    q = rms(q, params["gq"])
    k = rms(k, params["gk"])
    B, N, inner = q.shape
    M = k.shape[1]
    Dh = inner // num_heads
    q = q.reshape(B, N, num_heads, Dh).transpose(0, 2, 1, 3)
    k = k.reshape(B, M, num_heads, Dh).transpose(0, 2, 1, 3)
    v = v.reshape(B, M, num_heads, Dh).transpose(0, 2, 1, 3)
    s = jnp.sqrt(params["scale"]).reshape(1, num_heads, 1, 1)
    q = q * s
    k = k * s
    # apply_rotary_emb_ with theta = theta_context = 0 is the identity.
    scores = jnp.einsum("bhnd,bhmd->bhnm", q, k)       # SDPA scale = 1.0 (qk_norm=True)
    p = jax.nn.softmax(scores, axis=-1)
    o = jnp.einsum("bhnm,bhmd->bhnd", p, v)
    o = o.transpose(0, 2, 1, 3).reshape(B, N, inner)
    return o @ params["wo"] + params["bo"]             # dropout(p=0.0) is identity


# ----------------------------------- main ------------------------------------

if __name__ == "__main__":
    B, N, M = 2, 16, 8
    channels, num_heads, context_channels = 32, 4, 16
    Dh = channels // num_heads          # head_channels = channels // num_heads
    inner = num_heads * Dh              # inner_channels

    key = jax.random.PRNGKey(0)
    keys = jax.random.split(key, 12)
    f32 = jnp.float32
    # NOTE: the torch module zero-inits `out`; random weights are used so the output
    # projection path is actually exercised (synthetic, deterministic init).
    params = {
        "wq": 0.1 * jax.random.normal(keys[0], (channels, inner), f32),
        "bq": 0.1 * jax.random.normal(keys[1], (inner,), f32),
        "wk": 0.1 * jax.random.normal(keys[2], (context_channels, inner), f32),
        "bk": 0.1 * jax.random.normal(keys[3], (inner,), f32),
        "wv": 0.1 * jax.random.normal(keys[4], (context_channels, inner), f32),
        "bv": 0.1 * jax.random.normal(keys[5], (inner,), f32),
        "wo": 0.1 * jax.random.normal(keys[6], (inner, channels), f32),
        "bo": 0.1 * jax.random.normal(keys[7], (channels,), f32),
        "gq": jnp.ones((inner,), f32) + 0.05 * jax.random.normal(keys[8], (inner,), f32),
        "gk": jnp.ones((inner,), f32) + 0.05 * jax.random.normal(keys[9], (inner,), f32),
        "scale": jnp.linspace(0.5, 1.5, num_heads).astype(f32),   # nn.Parameter([H,1,1])
    }
    x = jax.random.normal(keys[10], (B, N, channels), f32)
    context = jax.random.normal(keys[11], (B, M, context_channels), f32)

    # q_tile=8 exercises the tiled query path (grid=(B, N//8)) plus the k/v
    # scratch-caching across query tiles.
    out = rope_cross_attention(x, context, params, num_heads, q_tile=8)
    out = jax.block_until_ready(out)

    ref = reference(x, context, params, num_heads)
    np.testing.assert_allclose(np.asarray(out), np.asarray(ref), atol=1e-4, rtol=1e-4)
    print("KERNEL_OK")
</pallas_src>

<mosaic_0001>
module attributes {stable_mosaic.version = 11 : i64} {
  func.func @_fused_cross_attn_kernel(%arg0: i32, %arg1: i32, %arg2: memref<1x8x32xf32, #tpu.memory_space<vmem>>, %arg3: memref<1x8x16xf32, #tpu.memory_space<vmem>>, %arg4: memref<32x32xf32, #tpu.memory_space<vmem>>, %arg5: memref<1x32xf32, #tpu.memory_space<vmem>>, %arg6: memref<1x32xf32, #tpu.memory_space<vmem>>, %arg7: memref<16x64xf32, #tpu.memory_space<vmem>>, %arg8: memref<1x64xf32, #tpu.memory_space<vmem>>, %arg9: memref<1x32xf32, #tpu.memory_space<vmem>>, %arg10: memref<32x32xf32, #tpu.memory_space<vmem>>, %arg11: memref<1x32xf32, #tpu.memory_space<vmem>>, %arg12: memref<1x8x32xf32, #tpu.memory_space<vmem>>, %arg13: memref<8x32xf32, #tpu.memory_space<vmem>>, %arg14: memref<8x32xf32, #tpu.memory_space<vmem>>) attributes {dimension_semantics = [#tpu.dimension_semantics<parallel>, #tpu.dimension_semantics<arbitrary>], iteration_bounds = array<i64: 2, 2>, scalar_prefetch = 0 : i64, scratch_operands = 2 : i64, tpu.core_type = #tpu.core_type<tc>, window_params = [{transform_indices = @transform_0, window_bounds = array<i64: 1, 8, 32>}, {transform_indices = @transform_1, window_bounds = array<i64: 1, 8, 16>}, {pipeline_mode = #tpu.pipeline_mode<synchronous>, transform_indices = @transform_2, window_bounds = array<i64: 32, 32>}, {pipeline_mode = #tpu.pipeline_mode<synchronous>, transform_indices = @transform_3, window_bounds = array<i64: 1, 32>}, {pipeline_mode = #tpu.pipeline_mode<synchronous>, transform_indices = @transform_4, window_bounds = array<i64: 1, 32>}, {pipeline_mode = #tpu.pipeline_mode<synchronous>, transform_indices = @transform_5, window_bounds = array<i64: 16, 64>}, {pipeline_mode = #tpu.pipeline_mode<synchronous>, transform_indices = @transform_6, window_bounds = array<i64: 1, 64>}, {pipeline_mode = #tpu.pipeline_mode<synchronous>, transform_indices = @transform_7, window_bounds = array<i64: 1, 32>}, {pipeline_mode = #tpu.pipeline_mode<synchronous>, transform_indices = @transform_8, window_bounds = array<i64: 32, 32>}, {pipeline_mode = #tpu.pipeline_mode<synchronous>, transform_indices = @transform_9, window_bounds = array<i64: 1, 32>}, {transform_indices = @transform_10, window_bounds = array<i64: 1, 8, 32>}]} {
    %c0_i32 = arith.constant 0 : i32
    %0 = arith.cmpi eq, %arg1, %c0_i32 : i32
    %1 = arith.extui %0 : i1 to i32
    %c0_i32_0 = arith.constant 0 : i32
    %2 = arith.cmpi ne, %1, %c0_i32_0 : i32
    scf.if %2 {
      %c0_44 = arith.constant 0 : index
      %c0_45 = arith.constant 0 : index
      %c0_46 = arith.constant 0 : index
      %98 = vector.load %arg3[%c0_44, %c0_45, %c0_46] : memref<1x8x16xf32, #tpu.memory_space<vmem>>, vector<1x8x16xf32>
      %99 = vector.shape_cast %98 : vector<1x8x16xf32> to vector<8x16xf32>
      %c0_47 = arith.constant 0 : index
      %c0_48 = arith.constant 0 : index
      %100 = vector.load %arg7[%c0_47, %c0_48] : memref<16x64xf32, #tpu.memory_space<vmem>>, vector<16x64xf32>
      %cst_49 = arith.constant dense<0.000000e+00> : vector<8x64xf32>
      %101 = tpu.matmul %99, %100, %cst_49 {dimension_numbers = #tpu.dot_dimension_numbers<[1], [0], [0], [1], [0, 0, 1, 1], [], []>} : vector<8x16xf32>, vector<16x64xf32>, vector<8x64xf32> -> vector<8x64xf32>
      %c0_50 = arith.constant 0 : index
      %c0_51 = arith.constant 0 : index
      %102 = vector.load %arg8[%c0_50, %c0_51] : memref<1x64xf32, #tpu.memory_space<vmem>>, vector<1x64xf32>
      %103 = vector.broadcast %102 : vector<1x64xf32> to vector<8x64xf32>
      %104 = arith.addf %101, %103 : vector<8x64xf32>
      %105 = vector.extract_strided_slice %104 {offsets = [0, 0], sizes = [8, 32], strides = [1, 1]} : vector<8x64xf32> to vector<8x32xf32>
      %106 = vector.extract_strided_slice %104 {offsets = [0, 32], sizes = [8, 32], strides = [1, 1]} : vector<8x64xf32> to vector<8x32xf32>
      %107 = arith.mulf %105, %105 : vector<8x32xf32>
      %cst_52 = arith.constant dense<0.000000e+00> : vector<8xf32>
      %108 = vector.multi_reduction <add>, %107, %cst_52 [1] : vector<8x32xf32> to vector<8xf32>
      %109 = vector.shape_cast %108 : vector<8xf32> to vector<8x1xf32>
      %cst_53 = arith.constant 3.200000e+01 : f32
      %110 = vector.broadcast %cst_53 : f32 to vector<8x1xf32>
      %111 = arith.divf %109, %110 : vector<8x1xf32>
      %cst_54 = arith.constant 9.99999997E-7 : f32
      %112 = vector.broadcast %cst_54 : f32 to vector<8x1xf32>
      %113 = arith.addf %111, %112 : vector<8x1xf32>
      %114 = math.rsqrt %113 : vector<8x1xf32>
      %115 = vector.broadcast %114 : vector<8x1xf32> to vector<8x32xf32>
      %116 = arith.mulf %105, %115 : vector<8x32xf32>
      %c0_55 = arith.constant 0 : index
      %c0_56 = arith.constant 0 : index
      %117 = vector.load %arg9[%c0_55, %c0_56] : memref<1x32xf32, #tpu.memory_space<vmem>>, vector<1x32xf32>
      %118 = vector.broadcast %117 : vector<1x32xf32> to vector<8x32xf32>
      %119 = arith.mulf %116, %118 : vector<8x32xf32>
      %c0_57 = arith.constant 0 : index
      %c0_58 = arith.constant 0 : index
      %120 = vector.load %arg13[%c0_57, %c0_58] : memref<8x32xf32, #tpu.memory_space<vmem>>, vector<8x32xf32>
      tpu.vector_store %arg13[%c0_57, %c0_58], %119 {strides = array<i32>} : memref<8x32xf32, #tpu.memory_space<vmem>>, vector<8x32xf32>,
      %c0_59 = arith.constant 0 : index
      %c0_60 = arith.constant 0 : index
      %121 = vector.load %arg14[%c0_59, %c0_60] : memref<8x32xf32, #tpu.memory_space<vmem>>, vector<8x32xf32>
      tpu.vector_store %arg14[%c0_59, %c0_60], %106 {strides = array<i32>} : memref<8x32xf32, #tpu.memory_space<vmem>>, vector<8x32xf32>,
    } else {
    }
    %c0 = arith.constant 0 : index
    %c0_1 = arith.constant 0 : index
    %c0_2 = arith.constant 0 : index
    %3 = vector.load %arg2[%c0, %c0_1, %c0_2] : memref<1x8x32xf32, #tpu.memory_space<vmem>>, vector<1x8x32xf32>
    %4 = vector.shape_cast %3 : vector<1x8x32xf32> to vector<8x32xf32>
    %c0_3 = arith.constant 0 : index
    %c0_4 = arith.constant 0 : index
    %5 = vector.load %arg4[%c0_3, %c0_4] : memref<32x32xf32, #tpu.memory_space<vmem>>, vector<32x32xf32>
    %cst = arith.constant dense<0.000000e+00> : vector<8x32xf32>
    %6 = tpu.matmul %4, %5, %cst {dimension_numbers = #tpu.dot_dimension_numbers<[1], [0], [0], [1], [0, 0, 1, 1], [], []>} : vector<8x32xf32>, vector<32x32xf32>, vector<8x32xf32> -> vector<8x32xf32>
    %c0_5 = arith.constant 0 : index
    %c0_6 = arith.constant 0 : index
    %7 = vector.load %arg5[%c0_5, %c0_6] : memref<1x32xf32, #tpu.memory_space<vmem>>, vector<1x32xf32>
    %8 = vector.broadcast %7 : vector<1x32xf32> to vector<8x32xf32>
    %9 = arith.addf %6, %8 : vector<8x32xf32>
    %10 = arith.mulf %9, %9 : vector<8x32xf32>
    %cst_7 = arith.constant dense<0.000000e+00> : vector<8xf32>
    %11 = vector.multi_reduction <add>, %10, %cst_7 [1] : vector<8x32xf32> to vector<8xf32>
    %12 = vector.shape_cast %11 : vector<8xf32> to vector<8x1xf32>
    %cst_8 = arith.constant 3.200000e+01 : f32
    %13 = vector.broadcast %cst_8 : f32 to vector<8x1xf32>
    %14 = arith.divf %12, %13 : vector<8x1xf32>
    %cst_9 = arith.constant 9.99999997E-7 : f32
    %15 = vector.broadcast %cst_9 : f32 to vector<8x1xf32>
    %16 = arith.addf %14, %15 : vector<8x1xf32>
    %17 = math.rsqrt %16 : vector<8x1xf32>
    %18 = vector.broadcast %17 : vector<8x1xf32> to vector<8x32xf32>
    %19 = arith.mulf %9, %18 : vector<8x32xf32>
    %c0_10 = arith.constant 0 : index
    %c0_11 = arith.constant 0 : index
    %20 = vector.load %arg6[%c0_10, %c0_11] : memref<1x32xf32, #tpu.memory_space<vmem>>, vector<1x32xf32>
    %21 = vector.broadcast %20 : vector<1x32xf32> to vector<8x32xf32>
    %22 = arith.mulf %19, %21 : vector<8x32xf32>
    %c0_12 = arith.constant 0 : index
    %c0_13 = arith.constant 0 : index
    %23 = vector.load %arg13[%c0_12, %c0_13] : memref<8x32xf32, #tpu.memory_space<vmem>>, vector<8x32xf32>
    %c0_14 = arith.constant 0 : index
    %c0_15 = arith.constant 0 : index
    %24 = vector.load %arg14[%c0_14, %c0_15] : memref<8x32xf32, #tpu.memory_space<vmem>>, vector<8x32xf32>
    %25 = vector.extract_strided_slice %22 {offsets = [0, 0], sizes = [8, 8], strides = [1, 1]} : vector<8x32xf32> to vector<8x8xf32>
    %26 = vector.extract_strided_slice %23 {offsets = [0, 0], sizes = [8, 8], strides = [1, 1]} : vector<8x32xf32> to vector<8x8xf32>
    %27 = vector.extract_strided_slice %24 {offsets = [0, 0], sizes = [8, 8], strides = [1, 1]} : vector<8x32xf32> to vector<8x8xf32>
    %cst_16 = arith.constant dense<0.000000e+00> : vector<8x8xf32>
    %28 = tpu.matmul %25, %26, %cst_16 {dimension_numbers = #tpu.dot_dimension_numbers<[1], [1], [0], [0], [0, 0, 1, 0], [], []>} : vector<8x8xf32>, vector<8x8xf32>, vector<8x8xf32> -> vector<8x8xf32>
    %cst_17 = arith.constant dense<0xFF800000> : vector<8xf32>
    %29 = vector.multi_reduction <maximumf>, %28, %cst_17 [1] : vector<8x8xf32> to vector<8xf32>
    %30 = vector.shape_cast %29 : vector<8xf32> to vector<8x1xf32>
    %31 = vector.broadcast %30 : vector<8x1xf32> to vector<8x8xf32>
    %32 = arith.subf %28, %31 : vector<8x8xf32>
    %33 = math.exp %32 : vector<8x8xf32>
    %cst_18 = arith.constant dense<0.000000e+00> : vector<8xf32>
    %34 = vector.multi_reduction <add>, %33, %cst_18 [1] : vector<8x8xf32> to vector<8xf32>
    %35 = vector.shape_cast %34 : vector<8xf32> to vector<8x1xf32>
    %cst_19 = arith.constant 1.000000e+00 : f32
    %36 = vector.broadcast %cst_19 : f32 to vector<8x1xf32>
    %37 = arith.divf %36, %35 : vector<8x1xf32>
    %cst_20 = arith.constant dense<0.000000e+00> : vector<8x8xf32>
    %38 = tpu.matmul %33, %27, %cst_20 {dimension_numbers = #tpu.dot_dimension_numbers<[1], [0], [0], [1], [0, 0, 1, 1], [], []>} : vector<8x8xf32>, vector<8x8xf32>, vector<8x8xf32> -> vector<8x8xf32>
    %39 = vector.broadcast %37 : vector<8x1xf32> to vector<8x8xf32>
    %40 = arith.mulf %38, %39 : vector<8x8xf32>
    %41 = vector.extract_strided_slice %22 {offsets = [0, 8], sizes = [8, 8], strides = [1, 1]} : vector<8x32xf32> to vector<8x8xf32>
    %42 = vector.extract_strided_slice %23 {offsets = [0, 8], sizes = [8, 8], strides = [1, 1]} : vector<8x32xf32> to vector<8x8xf32>
    %43 = vector.extract_strided_slice %24 {offsets = [0, 8], sizes = [8, 8], strides = [1, 1]} : vector<8x32xf32> to vector<8x8xf32>
    %cst_21 = arith.constant dense<0.000000e+00> : vector<8x8xf32>
    %44 = tpu.matmul %41, %42, %cst_21 {dimension_numbers = #tpu.dot_dimension_numbers<[1], [1], [0], [0], [0, 0, 1, 0], [], []>} : vector<8x8xf32>, vector<8x8xf32>, vector<8x8xf32> -> vector<8x8xf32>
    %cst_22 = arith.constant dense<0xFF800000> : vector<8xf32>
    %45 = vector.multi_reduction <maximumf>, %44, %cst_22 [1] : vector<8x8xf32> to vector<8xf32>
    %46 = vector.shape_cast %45 : vector<8xf32> to vector<8x1xf32>
    %47 = vector.broadcast %46 : vector<8x1xf32> to vector<8x8xf32>
    %48 = arith.subf %44, %47 : vector<8x8xf32>
    %49 = math.exp %48 : vector<8x8xf32>
    %cst_23 = arith.constant dense<0.000000e+00> : vector<8xf32>
    %50 = vector.multi_reduction <add>, %49, %cst_23 [1] : vector<8x8xf32> to vector<8xf32>
    %51 = vector.shape_cast %50 : vector<8xf32> to vector<8x1xf32>
    %cst_24 = arith.constant 1.000000e+00 : f32
    %52 = vector.broadcast %cst_24 : f32 to vector<8x1xf32>
    %53 = arith.divf %52, %51 : vector<8x1xf32>
    %cst_25 = arith.constant dense<0.000000e+00> : vector<8x8xf32>
    %54 = tpu.matmul %49, %43, %cst_25 {dimension_numbers = #tpu.dot_dimension_numbers<[1], [0], [0], [1], [0, 0, 1, 1], [], []>} : vector<8x8xf32>, vector<8x8xf32>, vector<8x8xf32> -> vector<8x8xf32>
    %55 = vector.broadcast %53 : vector<8x1xf32> to vector<8x8xf32>
    %56 = arith.mulf %54, %55 : vector<8x8xf32>
    %57 = vector.extract_strided_slice %22 {offsets = [0, 16], sizes = [8, 8], strides = [1, 1]} : vector<8x32xf32> to vector<8x8xf32>
    %58 = vector.extract_strided_slice %23 {offsets = [0, 16], sizes = [8, 8], strides = [1, 1]} : vector<8x32xf32> to vector<8x8xf32>
    %59 = vector.extract_strided_slice %24 {offsets = [0, 16], sizes = [8, 8], strides = [1, 1]} : vector<8x32xf32> to vector<8x8xf32>
    %cst_26 = arith.constant dense<0.000000e+00> : vector<8x8xf32>
    %60 = tpu.matmul %57, %58, %cst_26 {dimension_numbers = #tpu.dot_dimension_numbers<[1], [1], [0], [0], [0, 0, 1, 0], [], []>} : vector<8x8xf32>, vector<8x8xf32>, vector<8x8xf32> -> vector<8x8xf32>
    %cst_27 = arith.constant dense<0xFF800000> : vector<8xf32>
    %61 = vector.multi_reduction <maximumf>, %60, %cst_27 [1] : vector<8x8xf32> to vector<8xf32>
    %62 = vector.shape_cast %61 : vector<8xf32> to vector<8x1xf32>
    %63 = vector.broadcast %62 : vector<8x1xf32> to vector<8x8xf32>
    %64 = arith.subf %60, %63 : vector<8x8xf32>
    %65 = math.exp %64 : vector<8x8xf32>
    %cst_28 = arith.constant dense<0.000000e+00> : vector<8xf32>
    %66 = vector.multi_reduction <add>, %65, %cst_28 [1] : vector<8x8xf32> to vector<8xf32>
    %67 = vector.shape_cast %66 : vector<8xf32> to vector<8x1xf32>
    %cst_29 = arith.constant 1.000000e+00 : f32
    %68 = vector.broadcast %cst_29 : f32 to vector<8x1xf32>
    %69 = arith.divf %68, %67 : vector<8x1xf32>
    %cst_30 = arith.constant dense<0.000000e+00> : vector<8x8xf32>
    %70 = tpu.matmul %65, %59, %cst_30 {dimension_numbers = #tpu.dot_dimension_numbers<[1], [0], [0], [1], [0, 0, 1, 1], [], []>} : vector<8x8xf32>, vector<8x8xf32>, vector<8x8xf32> -> vector<8x8xf32>
    %71 = vector.broadcast %69 : vector<8x1xf32> to vector<8x8xf32>
    %72 = arith.mulf %70, %71 : vector<8x8xf32>
    %73 = vector.extract_strided_slice %22 {offsets = [0, 24], sizes = [8, 8], strides = [1, 1]} : vector<8x32xf32> to vector<8x8xf32>
    %74 = vector.extract_strided_slice %23 {offsets = [0, 24], sizes = [8, 8], strides = [1, 1]} : vector<8x32xf32> to vector<8x8xf32>
    %75 = vector.extract_strided_slice %24 {offsets = [0, 24], sizes = [8, 8], strides = [1, 1]} : vector<8x32xf32> to vector<8x8xf32>
    %cst_31 = arith.constant dense<0.000000e+00> : vector<8x8xf32>
    %76 = tpu.matmul %73, %74, %cst_31 {dimension_numbers = #tpu.dot_dimension_numbers<[1], [1], [0], [0], [0, 0, 1, 0], [], []>} : vector<8x8xf32>, vector<8x8xf32>, vector<8x8xf32> -> vector<8x8xf32>
    %cst_32 = arith.constant dense<0xFF800000> : vector<8xf32>
    %77 = vector.multi_reduction <maximumf>, %76, %cst_32 [1] : vector<8x8xf32> to vector<8xf32>
    %78 = vector.shape_cast %77 : vector<8xf32> to vector<8x1xf32>
    %79 = vector.broadcast %78 : vector<8x1xf32> to vector<8x8xf32>
    %80 = arith.subf %76, %79 : vector<8x8xf32>
    %81 = math.exp %80 : vector<8x8xf32>
    %cst_33 = arith.constant dense<0.000000e+00> : vector<8xf32>
    %82 = vector.multi_reduction <add>, %81, %cst_33 [1] : vector<8x8xf32> to vector<8xf32>
    %83 = vector.shape_cast %82 : vector<8xf32> to vector<8x1xf32>
    %cst_34 = arith.constant 1.000000e+00 : f32
    %84 = vector.broadcast %cst_34 : f32 to vector<8x1xf32>
    %85 = arith.divf %84, %83 : vector<8x1xf32>
    %cst_35 = arith.constant dense<0.000000e+00> : vector<8x8xf32>
    %86 = tpu.matmul %81, %75, %cst_35 {dimension_numbers = #tpu.dot_dimension_numbers<[1], [0], [0], [1], [0, 0, 1, 1], [], []>} : vector<8x8xf32>, vector<8x8xf32>, vector<8x8xf32> -> vector<8x8xf32>
    %87 = vector.broadcast %85 : vector<8x1xf32> to vector<8x8xf32>
    %88 = arith.mulf %86, %87 : vector<8x8xf32>
    %89 = tpu.concatenate %40, %56, %72, %88 in 1 : vector<8x8xf32>, vector<8x8xf32>, vector<8x8xf32>, vector<8x8xf32> -> vector<8x32xf32>
    %c0_36 = arith.constant 0 : index
    %c0_37 = arith.constant 0 : index
    %90 = vector.load %arg10[%c0_36, %c0_37] : memref<32x32xf32, #tpu.memory_space<vmem>>, vector<32x32xf32>
    %cst_38 = arith.constant dense<0.000000e+00> : vector<8x32xf32>
    %91 = tpu.matmul %89, %90, %cst_38 {dimension_numbers = #tpu.dot_dimension_numbers<[1], [0], [0], [1], [0, 0, 1, 1], [], []>} : vector<8x32xf32>, vector<32x32xf32>, vector<8x32xf32> -> vector<8x32xf32>
    %c0_39 = arith.constant 0 : index
    %c0_40 = arith.constant 0 : index
    %92 = vector.load %arg11[%c0_39, %c0_40] : memref<1x32xf32, #tpu.memory_space<vmem>>, vector<1x32xf32>
    %93 = vector.broadcast %92 : vector<1x32xf32> to vector<8x32xf32>
    %94 = arith.addf %91, %93 : vector<8x32xf32>
    %c0_41 = arith.constant 0 : index
    %c0_42 = arith.constant 0 : index
    %c0_43 = arith.constant 0 : index
    %95 = vector.load %arg12[%c0_41, %c0_42, %c0_43] : memref<1x8x32xf32, #tpu.memory_space<vmem>>, vector<1x8x32xf32>
    %96 = vector.shape_cast %95 : vector<1x8x32xf32> to vector<8x32xf32>
    %97 = vector.shape_cast %94 : vector<8x32xf32> to vector<1x8x32xf32>
    tpu.vector_store %arg12[%c0_41, %c0_42, %c0_43], %97 {strides = array<i32>} : memref<1x8x32xf32, #tpu.memory_space<vmem>>, vector<1x8x32xf32>,
    return
  }
  func.func @transform_0(%arg0: i32, %arg1: i32) -> (i32, i32, i32) {
    %c0_i32 = arith.constant 0 : i32
    %c0_i32_0 = arith.constant 0 : i32
    return %arg0, %arg1, %c0_i32 : i32, i32, i32
  }
  func.func @transform_1(%arg0: i32, %arg1: i32) -> (i32, i32, i32) {
    %c0_i32 = arith.constant 0 : i32
    %c0_i32_0 = arith.constant 0 : i32
    %c0_i32_1 = arith.constant 0 : i32
    return %arg0, %c0_i32, %c0_i32_0 : i32, i32, i32
  }
  func.func @transform_2(%arg0: i32, %arg1: i32) -> (i32, i32) {
    %c0_i32 = arith.constant 0 : i32
    %c0_i32_0 = arith.constant 0 : i32
    %c0_i32_1 = arith.constant 0 : i32
    return %c0_i32, %c0_i32_0 : i32, i32
  }
  func.func @transform_3(%arg0: i32, %arg1: i32) -> (i32, i32) {
    %c0_i32 = arith.constant 0 : i32
    %c0_i32_0 = arith.constant 0 : i32
    %c0_i32_1 = arith.constant 0 : i32
    return %c0_i32, %c0_i32_0 : i32, i32
  }
  func.func @transform_4(%arg0: i32, %arg1: i32) -> (i32, i32) {
    %c0_i32 = arith.constant 0 : i32
    %c0_i32_0 = arith.constant 0 : i32
    %c0_i32_1 = arith.constant 0 : i32
    return %c0_i32, %c0_i32_0 : i32, i32
  }
  func.func @transform_5(%arg0: i32, %arg1: i32) -> (i32, i32) {
    %c0_i32 = arith.constant 0 : i32
    %c0_i32_0 = arith.constant 0 : i32
    %c0_i32_1 = arith.constant 0 : i32
    return %c0_i32, %c0_i32_0 : i32, i32
  }
  func.func @transform_6(%arg0: i32, %arg1: i32) -> (i32, i32) {
    %c0_i32 = arith.constant 0 : i32
    %c0_i32_0 = arith.constant 0 : i32
    %c0_i32_1 = arith.constant 0 : i32
    return %c0_i32, %c0_i32_0 : i32, i32
  }
  func.func @transform_7(%arg0: i32, %arg1: i32) -> (i32, i32) {
    %c0_i32 = arith.constant 0 : i32
    %c0_i32_0 = arith.constant 0 : i32
    %c0_i32_1 = arith.constant 0 : i32
    return %c0_i32, %c0_i32_0 : i32, i32
  }
  func.func @transform_8(%arg0: i32, %arg1: i32) -> (i32, i32) {
    %c0_i32 = arith.constant 0 : i32
    %c0_i32_0 = arith.constant 0 : i32
    %c0_i32_1 = arith.constant 0 : i32
    return %c0_i32, %c0_i32_0 : i32, i32
  }
  func.func @transform_9(%arg0: i32, %arg1: i32) -> (i32, i32) {
    %c0_i32 = arith.constant 0 : i32
    %c0_i32_0 = arith.constant 0 : i32
    %c0_i32_1 = arith.constant 0 : i32
    return %c0_i32, %c0_i32_0 : i32, i32
  }
  func.func @transform_10(%arg0: i32, %arg1: i32) -> (i32, i32, i32) {
    %c0_i32 = arith.constant 0 : i32
    %c0_i32_0 = arith.constant 0 : i32
    return %arg0, %arg1, %c0_i32 : i32, i32, i32
  }
}

</mosaic_0001>

<llo_original>
// kernel: tpu_custom_call.1
$region0: #{tpu_custom_call.1}
  #allocation0 [shape = 'u32[]', space=smem, size = 0x4, offset = 0x4, fixed_abs, tag = 'smem constant byte address 0x4 - core index']
  #allocation1 [shape = 'u32[144,128]{1,0:T(1,128)}', space=vmem, size = 0x12000, scoped, tag = 'internal scratch']
  #allocation2 [shape = 'f32[8,32]{1,0:T(8,128)}', space=vmem, size = 0x1000, scoped, tag = 'scratch operand']
  #allocation3 [shape = 'f32[8,32]{1,0:T(8,128)}', space=vmem, size = 0x1000, scoped, tag = 'scratch operand']
  %s0 = inlined_call_operand.hbm [shape: f32[2,16,32], index: 0, kind: input, shape index: {}]
  %s1 = inlined_call_operand.hbm [shape: f32[2,8,16], index: 1, kind: input, shape index: {}]
  %s2 = inlined_call_operand.hbm [shape: f32[32,32], index: 2, kind: input, shape index: {}]
  %s3 = inlined_call_operand.vmem [shape: f32[1,32], index: 3, kind: input, shape index: {}]
  %s4 = inlined_call_operand.vmem [shape: f32[1,32], index: 4, kind: input, shape index: {}]
  %s5 = inlined_call_operand.vmem [shape: f32[16,64], index: 5, kind: input, shape index: {}]
  %s6 = inlined_call_operand.vmem [shape: f32[1,64], index: 6, kind: input, shape index: {}]
  %s7 = inlined_call_operand.vmem [shape: f32[1,32], index: 7, kind: input, shape index: {}]
  %s8 = inlined_call_operand.hbm [shape: f32[32,32], index: 8, kind: input, shape index: {}]
  %s9 = inlined_call_operand.vmem [shape: f32[1,32], index: 9, kind: input, shape index: {}]
  %s10 = inlined_call_operand.hbm [shape: f32[2,16,32], index: 10, kind: output, shape index: {}]
  %s11 = sld [smem:[#allocation0]]
  $region93: #{tpu_custom_call.1} parent=0
    _
  %s13 = ssub.s32 1, %s11
  %s14 = scalar_select 0, %s13, %s11
  $region1: #{tpu_custom_call.1} parent=0
    #allocation4 [shape = 'u8[8192]{0}', space=vmem, size = 0x2000, scoped, tag = 'input window, operand 0']
    #allocation5 [shape = 's32[2]{0}', space=sflag, size = 0x8, scoped, tag = 'scoped memory for tpu_custom_call.1']
    #allocation6 [shape = 's32[2]{0}', space=sflag, size = 0x8, scoped, tag = 'scoped memory for tpu_custom_call.1']
    #allocation7 [shape = 'u8[8192]{0}', space=vmem, size = 0x2000, scoped, tag = 'input window, operand 1']
    #allocation8 [shape = 's32[2]{0}', space=sflag, size = 0x8, scoped, tag = 'scoped memory for tpu_custom_call.1']
    #allocation9 [shape = 'u8[16384]{0}', space=vmem, size = 0x4000, scoped, tag = 'input window, operand 2, single buffered']
    #allocation10 [shape = 'u8[16384]{0}', space=vmem, size = 0x4000, scoped, tag = 'input window, operand 8, single buffered']
    #allocation11 [shape = 's32[1]{0}', space=sflag, size = 0x4, scoped, tag = 'scoped memory for tpu_custom_call.1']
    #allocation12 [shape = 'u8[8192]{0}', space=vmem, size = 0x2000, scoped, tag = 'output window, operand 0']
    %15 = vsyncpa [#allocation5], 0
    %s16 = scalar_lea.sflag [#allocation5], 1
    %17 = vsyncpa %s16, 0
    %18 = vsyncpa [#allocation8], 0
    %s19 = scalar_lea.sflag [#allocation8], 1
    %20 = vsyncpa %s19, 0
    %21 = vsyncpa [#allocation11], 0
    %22 = vsyncpa [#allocation6], 0
    %s23 = scalar_lea.sflag [#allocation6], 1
    %24 = vsyncpa %s23, 0
    loop: start=0, step=1, limit=6
    $region2: #{tpu_custom_call.1} parent=1 // loop_pre_header
      _
    $region3: #{tpu_custom_call.1} parent=1 // loop_header
      %s26 = sphi 0, %s30
      %p27 = scmp.ge.s32.totalorder %s26, 6
      %s33 = sphi 0, %s45
      %s34 = sphi 0, %s41
      %s35 = sphi 0, %s33
      %s36 = sphi 0, %s34
      %s37 = sphi 0, %s35
      %s38 = sphi 0, %s36
      %s50 = sphi 0, %s52
      %s53 = sphi 0, %s50
      %s54 = sphi 0, %s53
      %s70 = sphi 0, %s54
      %s76 = sphi 0, %s78
      %s79 = sphi 0, %s76
      %s80 = sphi 0, %s79
      %s96 = sphi 0, %s80
      %s100 = sphi 0, %s100
      %s102 = sphi 0, %s100
      %s103 = sphi 0, %s102
      %s117 = sphi 0, %s103
      %s121 = sphi 0, %s121
      %s123 = sphi 0, %s121
      %s124 = sphi 0, %s123
      %s138 = sphi 0, %s124
      %s142 = sphi 0, %s142
      %s144 = sphi 0, %s142
      %s145 = sphi 0, %s144
      %s159 = sphi 0, %s145
      %s163 = sphi 0, %s163
      %s165 = sphi 0, %s163
      %s166 = sphi 0, %s165
      %s180 = sphi 0, %s166
      %s184 = sphi 0, %s184
      %s186 = sphi 0, %s184
      %s187 = sphi 0, %s186
      %s201 = sphi 0, %s187
      %s205 = sphi 0, %s205
      %s207 = sphi 0, %s205
      %s208 = sphi 0, %s207
      %s222 = sphi 0, %s208
      %s226 = sphi 0, %s226
      %s228 = sphi 0, %s226
      %s229 = sphi 0, %s228
      %s243 = sphi 0, %s229
      %s247 = sphi 0, %s247
      %s249 = sphi 0, %s247
      %s250 = sphi 0, %s249
      %s264 = sphi 0, %s250
      %s272 = sphi 0, %s274
      %s275 = sphi 0, %s272
      %s276 = sphi 0, %s275
      %s292 = sphi 0, %s276
    $region4: #{tpu_custom_call.1} parent=1 // loop_header_branch
      %29 = sbr.rel (%p27) target = $region8
    $region5: #{tpu_custom_call.1} parent=1 // loop_body
      %s31 = ssub.s32 %s26, 1
      %s32 = ssub.s32 %s26, 2
      %s39 = sadd.s32 1, %s34
      %p40 = scmp.ge.s32.totalorder %s39, 2
      %s41 = scalar_select %p40, 0, %s39
      %s42 = sadd.s32 1, %s33
      %s43 = scalar_select %p40, %s42, %s33
      %p44 = scmp.ge.s32.totalorder %s43, 2
      %s45 = scalar_select %p44, 0, %s43
      %s46 = ssub.s32 %s33, %s45
      %s47 = ssub.s32 %s34, %s41
      %s48 = sor.u32 %s46, %s47
      %p49 = scmp.eq.s32.totalorder %s48, 0
      %s51 = sadd.s32 %s50, 1
      %s52 = scalar_select %p49, %s50, %s51
      %p55 = pneg %p49
      %p56 = scmp.eq.s32.totalorder %s26, 3
      %p57 = por %p55, %p56
      %p58 = scmp.ne.s32.totalorder %s50, %s53
      %p59 = scmp.eq.s32.totalorder %s26, 0
      %p60 = por %p58, %p59
      %p61 = scmp.ne.s32.totalorder %s50, %s53
      %p62 = scmp.eq.s32.totalorder %s31, 3
      %p63 = por %p61, %p62
      %p64 = scmp.ne.s32.totalorder %s53, %s54
      %p65 = scmp.eq.s32.totalorder %s31, 0
      %p66 = por %p64, %p65
      %p67 = scmp.ne.s32.totalorder %s53, %s54
      %p68 = scmp.eq.s32.totalorder %s32, 3
      %p69 = por %p67, %p68
      %p71 = scmp.ne.s32.totalorder %s54, %s70
      %p72 = scmp.eq.s32.totalorder %s32, 0
      %p73 = por %p71, %p72
      %s74 = ssub.s32 %s33, %s45
      %p75 = scmp.eq.s32.totalorder %s74, 0
      %s77 = sadd.s32 %s76, 1
      %s78 = scalar_select %p75, %s76, %s77
      %p81 = pneg %p75
      %p82 = scmp.eq.s32.totalorder %s26, 3
      %p83 = por %p81, %p82
      %p84 = scmp.ne.s32.totalorder %s76, %s79
      %p85 = scmp.eq.s32.totalorder %s26, 0
      %p86 = por %p84, %p85
      %p87 = scmp.ne.s32.totalorder %s76, %s79
      %p88 = scmp.eq.s32.totalorder %s31, 3
      %p89 = por %p87, %p88
      %p90 = scmp.ne.s32.totalorder %s79, %s80
      %p91 = scmp.eq.s32.totalorder %s31, 0
      %p92 = por %p90, %p91
      %p93 = scmp.ne.s32.totalorder %s79, %s80
      %p94 = scmp.eq.s32.totalorder %s32, 3
      %p95 = por %p93, %p94
      %p97 = scmp.ne.s32.totalorder %s80, %s96
      %p98 = scmp.eq.s32.totalorder %s32, 0
      %p99 = por %p97, %p98
      %s101 = sadd.s32 %s100, 1
      %p104 = scmp.eq.s32.totalorder %s26, 3
      %p105 = scmp.ne.s32.totalorder %s100, %s102
      %p106 = scmp.eq.s32.totalorder %s26, 0
      %p107 = por %p105, %p106
      %p108 = scmp.ne.s32.totalorder %s100, %s102
      %p109 = scmp.eq.s32.totalorder %s31, 3
      %p110 = por %p108, %p109
      %p111 = scmp.ne.s32.totalorder %s102, %s103
      %p112 = scmp.eq.s32.totalorder %s31, 0
      %p113 = por %p111, %p112
      %p114 = scmp.ne.s32.totalorder %s102, %s103
      %p115 = scmp.eq.s32.totalorder %s32, 3
      %p116 = por %p114, %p115
      %p118 = scmp.ne.s32.totalorder %s103, %s117
      %p119 = scmp.eq.s32.totalorder %s32, 0
      %p120 = por %p118, %p119
      %s122 = sadd.s32 %s121, 1
      %p125 = scmp.eq.s32.totalorder %s26, 3
      %p126 = scmp.ne.s32.totalorder %s121, %s123
      %p127 = scmp.eq.s32.totalorder %s26, 0
      %p128 = por %p126, %p127
      %p129 = scmp.ne.s32.totalorder %s121, %s123
      %p130 = scmp.eq.s32.totalorder %s31, 3
      %p131 = por %p129, %p130
      %p132 = scmp.ne.s32.totalorder %s123, %s124
      %p133 = scmp.eq.s32.totalorder %s31, 0
      %p134 = por %p132, %p133
      %p135 = scmp.ne.s32.totalorder %s123, %s124
      %p136 = scmp.eq.s32.totalorder %s32, 3
      %p137 = por %p135, %p136
      %p139 = scmp.ne.s32.totalorder %s124, %s138
      %p140 = scmp.eq.s32.totalorder %s32, 0
      %p141 = por %p139, %p140
      %s143 = sadd.s32 %s142, 1
      %p146 = scmp.eq.s32.totalorder %s26, 3
      %p147 = scmp.ne.s32.totalorder %s142, %s144
      %p148 = scmp.eq.s32.totalorder %s26, 0
      %p149 = por %p147, %p148
      %p150 = scmp.ne.s32.totalorder %s142, %s144
      %p151 = scmp.eq.s32.totalorder %s31, 3
      %p152 = por %p150, %p151
      %p153 = scmp.ne.s32.totalorder %s144, %s145
      %p154 = scmp.eq.s32.totalorder %s31, 0
      %p155 = por %p153, %p154
      %p156 = scmp.ne.s32.totalorder %s144, %s145
      %p157 = scmp.eq.s32.totalorder %s32, 3
      %p158 = por %p156, %p157
      %p160 = scmp.ne.s32.totalorder %s145, %s159
      %p161 = scmp.eq.s32.totalorder %s32, 0
      %p162 = por %p160, %p161
      %s164 = sadd.s32 %s163, 1
      %p167 = scmp.eq.s32.totalorder %s26, 3
      %p168 = scmp.ne.s32.totalorder %s163, %s165
      %p169 = scmp.eq.s32.totalorder %s26, 0
      %p170 = por %p168, %p169
      %p171 = scmp.ne.s32.totalorder %s163, %s165
      %p172 = scmp.eq.s32.totalorder %s31, 3
      %p173 = por %p171, %p172
      %p174 = scmp.ne.s32.totalorder %s165, %s166
      %p175 = scmp.eq.s32.totalorder %s31, 0
      %p176 = por %p174, %p175
      %p177 = scmp.ne.s32.totalorder %s165, %s166
      %p178 = scmp.eq.s32.totalorder %s32, 3
      %p179 = por %p177, %p178
      %p181 = scmp.ne.s32.totalorder %s166, %s180
      %p182 = scmp.eq.s32.totalorder %s32, 0
      %p183 = por %p181, %p182
      %s185 = sadd.s32 %s184, 1
      %p188 = scmp.eq.s32.totalorder %s26, 3
      %p189 = scmp.ne.s32.totalorder %s184, %s186
      %p190 = scmp.eq.s32.totalorder %s26, 0
      %p191 = por %p189, %p190
      %p192 = scmp.ne.s32.totalorder %s184, %s186
      %p193 = scmp.eq.s32.totalorder %s31, 3
      %p194 = por %p192, %p193
      %p195 = scmp.ne.s32.totalorder %s186, %s187
      %p196 = scmp.eq.s32.totalorder %s31, 0
      %p197 = por %p195, %p196
      %p198 = scmp.ne.s32.totalorder %s186, %s187
      %p199 = scmp.eq.s32.totalorder %s32, 3
      %p200 = por %p198, %p199
      %p202 = scmp.ne.s32.totalorder %s187, %s201
      %p203 = scmp.eq.s32.totalorder %s32, 0
      %p204 = por %p202, %p203
      %s206 = sadd.s32 %s205, 1
      %p209 = scmp.eq.s32.totalorder %s26, 3
      %p210 = scmp.ne.s32.totalorder %s205, %s207
      %p211 = scmp.eq.s32.totalorder %s26, 0
      %p212 = por %p210, %p211
      %p213 = scmp.ne.s32.totalorder %s205, %s207
      %p214 = scmp.eq.s32.totalorder %s31, 3
      %p215 = por %p213, %p214
      %p216 = scmp.ne.s32.totalorder %s207, %s208
      %p217 = scmp.eq.s32.totalorder %s31, 0
      %p218 = por %p216, %p217
      %p219 = scmp.ne.s32.totalorder %s207, %s208
      %p220 = scmp.eq.s32.totalorder %s32, 3
      %p221 = por %p219, %p220
      %p223 = scmp.ne.s32.totalorder %s208, %s222
      %p224 = scmp.eq.s32.totalorder %s32, 0
      %p225 = por %p223, %p224
      %s227 = sadd.s32 %s226, 1
      %p230 = scmp.eq.s32.totalorder %s26, 3
      %p231 = scmp.ne.s32.totalorder %s226, %s228
      %p232 = scmp.eq.s32.totalorder %s26, 0
      %p233 = por %p231, %p232
      %p234 = scmp.ne.s32.totalorder %s226, %s228
      %p235 = scmp.eq.s32.totalorder %s31, 3
      %p236 = por %p234, %p235
      %p237 = scmp.ne.s32.totalorder %s228, %s229
      %p238 = scmp.eq.s32.totalorder %s31, 0
      %p239 = por %p237, %p238
      %p240 = scmp.ne.s32.totalorder %s228, %s229
      %p241 = scmp.eq.s32.totalorder %s32, 3
      %p242 = por %p240, %p241
      %p244 = scmp.ne.s32.totalorder %s229, %s243
      %p245 = scmp.eq.s32.totalorder %s32, 0
      %p246 = por %p244, %p245
      %s248 = sadd.s32 %s247, 1
      %p251 = scmp.eq.s32.totalorder %s26, 3
      %p252 = scmp.ne.s32.totalorder %s247, %s249
      %p253 = scmp.eq.s32.totalorder %s26, 0
      %p254 = por %p252, %p253
      %p255 = scmp.ne.s32.totalorder %s247, %s249
      %p256 = scmp.eq.s32.totalorder %s31, 3
      %p257 = por %p255, %p256
      %p258 = scmp.ne.s32.totalorder %s249, %s250
      %p259 = scmp.eq.s32.totalorder %s31, 0
      %p260 = por %p258, %p259
      %p261 = scmp.ne.s32.totalorder %s249, %s250
      %p262 = scmp.eq.s32.totalorder %s32, 3
      %p263 = por %p261, %p262
      %p265 = scmp.ne.s32.totalorder %s250, %s264
      %p266 = scmp.eq.s32.totalorder %s32, 0
      %p267 = por %p265, %p266
      %s268 = ssub.s32 %s33, %s45
      %s269 = ssub.s32 %s34, %s41
      %s270 = sor.u32 %s268, %s269
      %p271 = scmp.eq.s32.totalorder %s270, 0
      %s273 = sadd.s32 %s272, 1
      %s274 = scalar_select %p271, %s272, %s273
      %p277 = pneg %p271
      %p278 = scmp.eq.s32.totalorder %s26, 3
      %p279 = por %p277, %p278
      %p280 = scmp.ne.s32.totalorder %s272, %s275
      %p281 = scmp.eq.s32.totalorder %s26, 0
      %p282 = por %p280, %p281
      %p283 = scmp.ne.s32.totalorder %s272, %s275
      %p284 = scmp.eq.s32.totalorder %s31, 3
      %p285 = por %p283, %p284
      %p286 = scmp.ne.s32.totalorder %s275, %s276
      %p287 = scmp.eq.s32.totalorder %s31, 0
      %p288 = por %p286, %p287
      %p289 = scmp.ne.s32.totalorder %s275, %s276
      %p290 = scmp.eq.s32.totalorder %s32, 3
      %p291 = por %p289, %p290
      %p293 = scmp.ne.s32.totalorder %s276, %s292
      %p294 = scmp.eq.s32.totalorder %s32, 0
      %p295 = por %p293, %p294
      %p296 = scmp.le.s32.totalorder 1, %s26
      %p297 = scmp.lt.s32.totalorder %s26, 5
      %p298 = pnand %p296, %p297
      %p299 = pneg %p298
      // Predicated region
      $region9: #{tpu_custom_call.1} parent=5 // pred_check
        _
      $region10: #{tpu_custom_call.1} parent=5 // pred_check_branch
        %301 = sbr.rel (%p298) target = $region12
      $region11: #{tpu_custom_call.1} parent=5 // pred_region
        %s302 = ssub.s32 %s26, 1
        // Predicated region
        $region13: #{tpu_custom_call.1} parent=11 // pred_check
          %p303 = pneg %p113
        $region14: #{tpu_custom_call.1} parent=11 // pred_check_branch
          %305 = sbr.rel (%p303) target = $region16
        $region15: #{tpu_custom_call.1} parent=11 // pred_region
          %s307 = ssub.s32 512, 512
          %308 = vsyncadd [#allocation8], %s307
          %s309 = sshll.u32 [#allocation9], 4
          %s310 = int_to_ptr.vmem [resolvable:$true] %s309
          %315 = dma.hbm_to_vmem [thread:$0]  %s2, 512, %s310, [#allocation8], 128, 128, 8
        $region16: #{tpu_custom_call.1} parent=11 // pred_fallthru
          _
        // Predicated region
        $region17: #{tpu_custom_call.1} parent=11 // pred_check
          %p316 = pneg %p134
        $region18: #{tpu_custom_call.1} parent=11 // pred_check_branch
          %318 = sbr.rel (%p316) target = $region20
        $region19: #{tpu_custom_call.1} parent=11 // pred_region
          _
        $region20: #{tpu_custom_call.1} parent=11 // pred_fallthru
          _
        // Predicated region
        $region21: #{tpu_custom_call.1} parent=11 // pred_check
          %p319 = pneg %p155
        $region22: #{tpu_custom_call.1} parent=11 // pred_check_branch
          %321 = sbr.rel (%p319) target = $region24
        $region23: #{tpu_custom_call.1} parent=11 // pred_region
          _
        $region24: #{tpu_custom_call.1} parent=11 // pred_fallthru
          _
        // Predicated region
        $region25: #{tpu_custom_call.1} parent=11 // pred_check
          %p322 = pneg %p176
        $region26: #{tpu_custom_call.1} parent=11 // pred_check_branch
          %324 = sbr.rel (%p322) target = $region28
        $region27: #{tpu_custom_call.1} parent=11 // pred_region
          _
        $region28: #{tpu_custom_call.1} parent=11 // pred_fallthru
          _
        // Predicated region
        $region29: #{tpu_custom_call.1} parent=11 // pred_check
          %p325 = pneg %p197
        $region30: #{tpu_custom_call.1} parent=11 // pred_check_branch
          %327 = sbr.rel (%p325) target = $region32
        $region31: #{tpu_custom_call.1} parent=11 // pred_region
          _
        $region32: #{tpu_custom_call.1} parent=11 // pred_fallthru
          _
        // Predicated region
        $region33: #{tpu_custom_call.1} parent=11 // pred_check
          %p328 = pneg %p218
        $region34: #{tpu_custom_call.1} parent=11 // pred_check_branch
          %330 = sbr.rel (%p328) target = $region36
        $region35: #{tpu_custom_call.1} parent=11 // pred_region
          _
        $region36: #{tpu_custom_call.1} parent=11 // pred_fallthru
          _
        // Predicated region
        $region37: #{tpu_custom_call.1} parent=11 // pred_check
          %p331 = pneg %p239
        $region38: #{tpu_custom_call.1} parent=11 // pred_check_branch
          %333 = sbr.rel (%p331) target = $region40
        $region39: #{tpu_custom_call.1} parent=11 // pred_region
          %s335 = ssub.s32 512, 512
          %336 = vsyncadd [#allocation11], %s335
          %s337 = sshll.u32 [#allocation10], 4
          %s338 = int_to_ptr.vmem [resolvable:$true] %s337
          %343 = dma.hbm_to_vmem [thread:$0]  %s8, 512, %s338, [#allocation11], 128, 128, 8
        $region40: #{tpu_custom_call.1} parent=11 // pred_fallthru
          _
        // Predicated region
        $region41: #{tpu_custom_call.1} parent=11 // pred_check
          %p344 = pneg %p260
        $region42: #{tpu_custom_call.1} parent=11 // pred_check_branch
          %346 = sbr.rel (%p344) target = $region44
        $region43: #{tpu_custom_call.1} parent=11 // pred_region
          _
        $region44: #{tpu_custom_call.1} parent=11 // pred_fallthru
          _
      $region12: #{tpu_custom_call.1} parent=5 // pred_fallthru
        _
      %p347 = scmp.lt.s32.totalorder %s26, 4
      // Predicated region
      $region45: #{tpu_custom_call.1} parent=5 // pred_check
        %p348 = pneg %p347
      $region46: #{tpu_custom_call.1} parent=5 // pred_check_branch
        %350 = sbr.rel (%p348) target = $region48
      $region47: #{tpu_custom_call.1} parent=5 // pred_region
        // Predicated region
        $region49: #{tpu_custom_call.1} parent=47 // pred_check
          %p351 = pneg %p60
        $region50: #{tpu_custom_call.1} parent=47 // pred_check_branch
          %353 = sbr.rel (%p351) target = $region52
        $region51: #{tpu_custom_call.1} parent=47 // pred_region
          %s354 = sand.u32 %s50, 1
          %s355 = scalar_lea.sflag [#allocation5], %s354
          %s356 = sand.u32 %s50, 1
          %s357 = smul.addr %s356, 8
          %s358 = scalar_lea.vmem [#allocation4], %s357
          %s360 = ssub.s32 128, 128
          %361 = vsyncadd %s355, %s360
          %s362 = smul.addr %s33, 2
          %s363 = sadd.s32 %s34, %s362
          %s364 = smul.addr %s363, 128
          %s365 = scalar_lea.hbm %s0, %s364
          %s367 = sshll.u32 %s358, 4
          %s368 = int_to_ptr.vmem [resolvable:$true] %s367
          %370 = dma.hbm_to_vmem [thread:$0]  %s365, 128, %s368, %s355
        $region52: #{tpu_custom_call.1} parent=47 // pred_fallthru
          _
        // Predicated region
        $region53: #{tpu_custom_call.1} parent=47 // pred_check
          %p371 = pneg %p86
        $region54: #{tpu_custom_call.1} parent=47 // pred_check_branch
          %373 = sbr.rel (%p371) target = $region56
        $region55: #{tpu_custom_call.1} parent=47 // pred_region
          %s374 = sand.u32 %s26, 1
          %s375 = scalar_lea.sflag [#allocation8], %s374
          %s376 = sand.u32 %s76, 1
          %s377 = smul.addr %s376, 8
          %s378 = scalar_lea.vmem [#allocation7], %s377
          %s380 = ssub.s32 128, 128
          %381 = vsyncadd %s375, %s380
          %s382 = smul.addr %s33, 128
          %s383 = scalar_lea.hbm %s1, %s382
          %s385 = sshll.u32 %s378, 4
          %s386 = int_to_ptr.vmem [resolvable:$true] %s385
          %388 = dma.hbm_to_vmem [thread:$0]  %s383, 128, %s386, %s375
        $region56: #{tpu_custom_call.1} parent=47 // pred_fallthru
          _
      $region48: #{tpu_custom_call.1} parent=5 // pred_fallthru
        _
      %p389 = scmp.le.s32.totalorder 1, %s26
      %p390 = scmp.lt.s32.totalorder %s26, 5
      %p391 = pnand %p389, %p390
      %p392 = pneg %p391
      // Predicated region
      $region57: #{tpu_custom_call.1} parent=5 // pred_check
        _
      $region58: #{tpu_custom_call.1} parent=5 // pred_check_branch
        %394 = sbr.rel (%p391) target = $region60
      $region59: #{tpu_custom_call.1} parent=5 // pred_region
        %s395 = ssub.s32 %s26, 1
        %s396 = sand.u32 %s53, 1
        %s397 = scalar_lea.sflag [#allocation5], %s396
        %s398 = sand.u32 %s53, 1
        %s399 = smul.addr %s398, 8
        %s400 = scalar_lea.vmem [#allocation4], %s399
        // Predicated region
        $region61: #{tpu_custom_call.1} parent=59 // pred_check
          %p401 = pneg %p66
        $region62: #{tpu_custom_call.1} parent=59 // pred_check_branch
          %403 = sbr.rel (%p401) target = $region64
        $region63: #{tpu_custom_call.1} parent=59 // pred_region
          %404 = dma.done %s397, 128
        $region64: #{tpu_custom_call.1} parent=59 // pred_fallthru
          _
        %s405 = sand.u32 %s31, 1
        %s406 = scalar_lea.sflag [#allocation8], %s405
        %s407 = sand.u32 %s79, 1
        %s408 = smul.addr %s407, 8
        %s409 = scalar_lea.vmem [#allocation7], %s408
        // Predicated region
        $region65: #{tpu_custom_call.1} parent=59 // pred_check
          %p410 = pneg %p92
        $region66: #{tpu_custom_call.1} parent=59 // pred_check_branch
          %412 = sbr.rel (%p410) target = $region68
        $region67: #{tpu_custom_call.1} parent=59 // pred_region
          %413 = dma.done %s406, 128
        $region68: #{tpu_custom_call.1} parent=59 // pred_fallthru
          _
        // Predicated region
        $region69: #{tpu_custom_call.1} parent=59 // pred_check
          %p414 = pneg %p113
        $region70: #{tpu_custom_call.1} parent=59 // pred_check_branch
          %416 = sbr.rel (%p414) target = $region72
        $region71: #{tpu_custom_call.1} parent=59 // pred_region
          %417 = dma.done [#allocation8], 512
        $region72: #{tpu_custom_call.1} parent=59 // pred_fallthru
          _
        // Predicated region
        $region73: #{tpu_custom_call.1} parent=59 // pred_check
          %p418 = pneg %p239
        $region74: #{tpu_custom_call.1} parent=59 // pred_check_branch
          %420 = sbr.rel (%p418) target = $region76
        $region75: #{tpu_custom_call.1} parent=59 // pred_region
          %421 = dma.done [#allocation11], 512
        $region76: #{tpu_custom_call.1} parent=59 // pred_fallthru
          _
        %s422 = sand.u32 %s53, 1
        %s423 = scalar_lea.sflag [#allocation5], %s422
        %s424 = sand.u32 %s53, 1
        %s425 = smul.addr %s424, 8
        %s426 = scalar_lea.vmem [#allocation4], %s425
        %p427 = pneg %p66
        %p428 = pneg %p63
        %s429 = sand.u32 %s31, 1
        %s430 = scalar_lea.sflag [#allocation8], %s429
        %s431 = sand.u32 %s79, 1
        %s432 = smul.addr %s431, 8
        %s433 = scalar_lea.vmem [#allocation7], %s432
        %p434 = pneg %p92
        %p435 = pneg %p89
        %p436 = pneg %p113
        %p437 = pneg %p110
        %p438 = pneg %p134
        %p439 = pneg %p131
        %p440 = pneg %p155
        %p441 = pneg %p152
        %p442 = pneg %p176
        %p443 = pneg %p173
        %p444 = pneg %p197
        %p445 = pneg %p194
        %p446 = pneg %p218
        %p447 = pneg %p215
        %p448 = pneg %p239
        %p449 = pneg %p236
        %p450 = pneg %p260
        %p451 = pneg %p257
        %p452 = pneg %p288
        %p453 = pneg %p285
        %s454 = sand.u32 %s275, 1
        %s455 = scalar_lea.sflag [#allocation6], %s454
        %s456 = sand.u32 %s275, 1
        %s457 = smul.addr %s456, 8
        %s458 = scalar_lea.vmem [#allocation12], %s457
        %p459 = scmp.eq.s32.totalorder %s36, 0
        // Predicated region
        $region77: #{tpu_custom_call.1} parent=59 // pred_check
          %p460 = pneg %p459
        $region78: #{tpu_custom_call.1} parent=59 // pred_check_branch
          %462 = sbr.rel (%p460) target = $region80
        $region79: #{tpu_custom_call.1} parent=59 // pred_region
          %v463 = vld [vmem:[%s409] sm:$0xff]
          %v464 = vld [vmem:[%s5] sm:$0xff]
          %v465 = vld [vmem:[%s5 + $0x8] sm:$0xff]
          %v466 = vld [vmem:[%s6] sm:$0x1]
          %v468 = vlaneseq
          %v469 = vshrl.u32 %v468, 7
          %v470 = vsub.s32 0, %v469
          %v471 = vrot.slane %v466, %v470
          %vm473 = vcmask 130048
          %v475 = vsel %vm473, %v463, 0
          %477 = vmatprep.subr.mxu0 0.0
          %478 = vmatpush1.msra.mxu0 %v464
          %479 = vmatprep.subr.mxu0 0.0
          %480 = vmatpush1.msra.mxu0 %v465
          %481 = vmatprep.subr.mxu0 0.0
          %482 = vmatpush1.msra.mxu0 0.0
          %483 = vmatprep.subr.mxu0 0.0
          %484 = vmatpush1.msra.mxu0 0.0
          %485 = vmatprep.subr.mxu0 0.0
          %486 = vmatpush1.msra.mxu0 0.0
          %487 = vmatprep.subr.mxu0 0.0
          %488 = vmatpush1.msra.mxu0 0.0
          %489 = vmatprep.subr.mxu0 0.0
          %490 = vmatpush1.msra.mxu0 0.0
          %491 = vmatprep.subr.mxu0 0.0
          %492 = vmatpush1.msra.mxu0 0.0
          %493 = vmatprep.subr.mxu0 0.0
          %494 = vmatpush1.msra.mxu0 0.0
          %495 = vmatprep.subr.mxu0 0.0
          %496 = vmatpush1.msra.mxu0 0.0
          %497 = vmatprep.subr.mxu0 0.0
          %498 = vmatpush1.msra.mxu0 0.0
          %499 = vmatprep.subr.mxu0 0.0
          %500 = vmatpush1.msra.mxu0 0.0
          %501 = vmatprep.subr.mxu0 0.0
          %502 = vmatpush1.msra.mxu0 0.0
          %503 = vmatprep.subr.mxu0 0.0
          %504 = vmatpush1.msra.mxu0 0.0
          %505 = vmatprep.subr.mxu0 0.0
          %506 = vmatpush1.msra.mxu0 0.0
          %507 = vmatprep.subr.mxu0 0.0
          %508 = vmatpush1.msra.mxu0 0.0
          %509 = vmatprep.subr.mxu0 0.0
          %510 = vmatpush1.msra.mxu0 0.0
          %511 = vmatprep.subr.mxu0 0.0
          %512 = vmatpush1.msra.mxu0 0.0
          %513 = vmatprep.subr.mxu0 0.0
          %514 = vmatpush1.msra.mxu0 0.0
          %515 = vmatprep.subr.mxu0 0.0
          %516 = vmatpush1.msra.mxu0 0.0
          %517 = vmatprep.subr.mxu0 0.0
          %518 = vmatpush1.msra.mxu0 0.0
          %519 = vmatprep.subr.mxu0 0.0
          %520 = vmatpush1.msra.mxu0 0.0
          %521 = vmatprep.subr.mxu0 0.0
          %522 = vmatpush1.msra.mxu0 0.0
          %523 = vmatprep.subr.mxu0 0.0
          %524 = vmatpush1.msra.mxu0 0.0
          %525 = vmatprep.subr.mxu0 0.0
          %526 = vmatpush1.msra.mxu0 0.0
          %527 = vmatprep.subr.mxu0 0.0
          %528 = vmatpush1.msra.mxu0 0.0
          %529 = vmatprep.subr.mxu0 0.0
          %530 = vmatpush1.msra.mxu0 0.0
          %531 = vmatprep.subr.mxu0 0.0
          %532 = vmatpush1.msra.mxu0 0.0
          %533 = vmatprep.subr.mxu0 0.0
          %534 = vmatpush1.msra.mxu0 0.0
          %535 = vmatprep.subr.mxu0 0.0
          %536 = vmatpush1.msra.mxu0 0.0
          %537 = vmatprep.subr.mxu0 0.0
          %538 = vmatpush1.msra.mxu0 0.0
          %539 = vmatprep.subr.mxu0 0.0
          %540 = vmatpush1.msra.mxu0 0.0
          %541 = vmatprep.mubr.f32.mxu0 0.0
          %542 = vmatmul.mubr.f32.gmra.mrb[0].mxu0 %v475
          %v543 = vpop.f32.mrb[0].mxu0
          %v544 = vadd.f32 %v471, %v543
          %v545 = vpop.f32.mrb[0].mxu0
          %546 = vdwg.mxu0
          %v547 = vmul.f32 %v544, %v544
          %vm548 = vcmask 261120
          %v549 = vsel %vm548, %v547, 0.0
          %550 = vadd.xlane.f32.xlu0 %v549
          %v551 = vpop.xlane.xlu0 %550
          %v552 = vrcp.pop 32.0
          %v553 = vmul.f32 %v551, %v552
          %v554 = vadd.f32 %v553, 1e-06
          %v555 = vrsqrt.pop %v554
          %v556 = vmul.f32 %v544, %v555
          %v557 = vld [vmem:[%s7] sm:$0x1]
          %v559 = vlaneseq
          %v560 = vshrl.u32 %v559, 7
          %v561 = vsub.s32 0, %v560
          %v562 = vrot.slane %v557, %v561
          %v564 = vmul.f32 %v556, %v562
          %565 = vst.msk [vmem:[#allocation2] sm:$0xff] %vm548, %v564
          %567 = vrot.lane.b32.xlu0 %v544, 96
          %v568 = vpop.permute.xlu0 %567
          %570 = vst.msk [vmem:[#allocation3] sm:$0xff] %vm548, %v568
        $region80: #{tpu_custom_call.1} parent=59 // pred_fallthru
          _
        %v571 = vld [vmem:[%s400] sm:$0xff]
        %v572 = vld [vmem:[#allocation9] sm:$0xff]
        %v573 = vld [vmem:[#allocation9 + $0x8] sm:$0xff]
        %v574 = vld [vmem:[#allocation9 + $0x10] sm:$0xff]
        %v575 = vld [vmem:[#allocation9 + $0x18] sm:$0xff]
        %v576 = vld [vmem:[%s3] sm:$0x1]
        %v578 = vlaneseq
        %v579 = vshrl.u32 %v578, 7
        %v580 = vsub.s32 0, %v579
        %v581 = vrot.slane %v576, %v580
        %vm583 = vcmask 261120
        %v585 = vsel %vm583, %v571, 0
        %587 = vmatprep.subr.mxu0 0.0
        %588 = vmatpush1.msra.mxu0 %v572
        %589 = vmatprep.subr.mxu0 0.0
        %590 = vmatpush1.msra.mxu0 %v573
        %591 = vmatprep.subr.mxu0 0.0
        %592 = vmatpush1.msra.mxu0 %v574
        %593 = vmatprep.subr.mxu0 0.0
        %594 = vmatpush1.msra.mxu0 %v575
        %595 = vmatprep.subr.mxu0 0.0
        %596 = vmatpush1.msra.mxu0 0.0
        %597 = vmatprep.subr.mxu0 0.0
        %598 = vmatpush1.msra.mxu0 0.0
        %599 = vmatprep.subr.mxu0 0.0
        %600 = vmatpush1.msra.mxu0 0.0
        %601 = vmatprep.subr.mxu0 0.0
        %602 = vmatpush1.msra.mxu0 0.0
        %603 = vmatprep.subr.mxu0 0.0
        %604 = vmatpush1.msra.mxu0 0.0
        %605 = vmatprep.subr.mxu0 0.0
        %606 = vmatpush1.msra.mxu0 0.0
        %607 = vmatprep.subr.mxu0 0.0
        %608 = vmatpush1.msra.mxu0 0.0
        %609 = vmatprep.subr.mxu0 0.0
        %610 = vmatpush1.msra.mxu0 0.0
        %611 = vmatprep.subr.mxu0 0.0
        %612 = vmatpush1.msra.mxu0 0.0
        %613 = vmatprep.subr.mxu0 0.0
        %614 = vmatpush1.msra.mxu0 0.0
        %615 = vmatprep.subr.mxu0 0.0
        %616 = vmatpush1.msra.mxu0 0.0
        %617 = vmatprep.subr.mxu0 0.0
        %618 = vmatpush1.msra.mxu0 0.0
        %619 = vmatprep.subr.mxu0 0.0
        %620 = vmatpush1.msra.mxu0 0.0
        %621 = vmatprep.subr.mxu0 0.0
        %622 = vmatpush1.msra.mxu0 0.0
        %623 = vmatprep.subr.mxu0 0.0
        %624 = vmatpush1.msra.mxu0 0.0
        %625 = vmatprep.subr.mxu0 0.0
        %626 = vmatpush1.msra.mxu0 0.0
        %627 = vmatprep.subr.mxu0 0.0
        %628 = vmatpush1.msra.mxu0 0.0
        %629 = vmatprep.subr.mxu0 0.0
        %630 = vmatpush1.msra.mxu0 0.0
        %631 = vmatprep.subr.mxu0 0.0
        %632 = vmatpush1.msra.mxu0 0.0
        %633 = vmatprep.subr.mxu0 0.0
        %634 = vmatpush1.msra.mxu0 0.0
        %635 = vmatprep.subr.mxu0 0.0
        %636 = vmatpush1.msra.mxu0 0.0
        %637 = vmatprep.subr.mxu0 0.0
        %638 = vmatpush1.msra.mxu0 0.0
        %639 = vmatprep.subr.mxu0 0.0
        %640 = vmatpush1.msra.mxu0 0.0
        %641 = vmatprep.subr.mxu0 0.0
        %642 = vmatpush1.msra.mxu0 0.0
        %643 = vmatprep.subr.mxu0 0.0
        %644 = vmatpush1.msra.mxu0 0.0
        %645 = vmatprep.subr.mxu0 0.0
        %646 = vmatpush1.msra.mxu0 0.0
        %647 = vmatprep.subr.mxu0 0.0
        %648 = vmatpush1.msra.mxu0 0.0
        %649 = vmatprep.subr.mxu0 0.0
        %650 = vmatpush1.msra.mxu0 0.0
        %651 = vmatprep.mubr.f32.mxu0 0.0
        %652 = vmatmul.mubr.f32.gmra.mrb[0].mxu0 %v585
        %v653 = vpop.f32.mrb[0].mxu0
        %v654 = vadd.f32 %v581, %v653
        %v655 = vpop.f32.mrb[0].mxu0
        %656 = vdwg.mxu0
        %v657 = vmul.f32 %v654, %v654
        %v658 = vsel %vm583, %v657, 0.0
        %659 = vadd.xlane.f32.xlu0 %v658
        %v660 = vpop.xlane.xlu0 %659
        %v661 = vrcp.pop 32.0
        %v662 = vmul.f32 %v660, %v661
        %v663 = vadd.f32 %v662, 1e-06
        %v664 = vrsqrt.pop %v663
        %v665 = vmul.f32 %v654, %v664
        %v666 = vld [vmem:[%s4] sm:$0x1]
        %v668 = vlaneseq
        %v669 = vshrl.u32 %v668, 7
        %v670 = vsub.s32 0, %v669
        %v671 = vrot.slane %v666, %v670
        %v673 = vmul.f32 %v665, %v671
        %v674 = vld [vmem:[#allocation2] sm:$0xff]
        %v675 = vld [vmem:[#allocation3] sm:$0xff]
        %vm676 = vcmask 64512
        %v678 = vsel %vm676, %v673, 0
        %v681 = vsel %vm676, %v674, 0
        %683 = vmatprep.subr.mxu0 0.0
        %684 = vmatpush1.xpose.msra.mxu0 %v681
        %685 = vmatprep.subr.mxu0 0.0
        %686 = vmatpush1.xpose.msra.mxu0 0.0
        %687 = vmatprep.subr.mxu0 0.0
        %688 = vmatpush1.xpose.msra.mxu0 0.0
        %689 = vmatprep.subr.mxu0 0.0
        %690 = vmatpush1.xpose.msra.mxu0 0.0
        %691 = vmatprep.subr.mxu0 0.0
        %692 = vmatpush1.xpose.msra.mxu0 0.0
        %693 = vmatprep.subr.mxu0 0.0
        %694 = vmatpush1.xpose.msra.mxu0 0.0
        %695 = vmatprep.subr.mxu0 0.0
        %696 = vmatpush1.xpose.msra.mxu0 0.0
        %697 = vmatprep.subr.mxu0 0.0
        %698 = vmatpush1.xpose.msra.mxu0 0.0
        %699 = vmatprep.subr.mxu0 0.0
        %700 = vmatpush1.xpose.msra.mxu0 0.0
        %701 = vmatprep.subr.mxu0 0.0
        %702 = vmatpush1.xpose.msra.mxu0 0.0
        %703 = vmatprep.subr.mxu0 0.0
        %704 = vmatpush1.xpose.msra.mxu0 0.0
        %705 = vmatprep.subr.mxu0 0.0
        %706 = vmatpush1.xpose.msra.mxu0 0.0
        %707 = vmatprep.subr.mxu0 0.0
        %708 = vmatpush1.xpose.msra.mxu0 0.0
        %709 = vmatprep.subr.mxu0 0.0
        %710 = vmatpush1.xpose.msra.mxu0 0.0
        %711 = vmatprep.subr.mxu0 0.0
        %712 = vmatpush1.xpose.msra.mxu0 0.0
        %713 = vmatprep.subr.mxu0 0.0
        %714 = vmatpush1.xpose.msra.mxu0 0.0
        %715 = vmatprep.subr.mxu0 0.0
        %716 = vmatpush1.xpose.msra.mxu0 0.0
        %717 = vmatprep.subr.mxu0 0.0
        %718 = vmatpush1.xpose.msra.mxu0 0.0
        %719 = vmatprep.subr.mxu0 0.0
        %720 = vmatpush1.xpose.msra.mxu0 0.0
        %721 = vmatprep.subr.mxu0 0.0
        %722 = vmatpush1.xpose.msra.mxu0 0.0
        %723 = vmatprep.subr.mxu0 0.0
        %724 = vmatpush1.xpose.msra.mxu0 0.0
        %725 = vmatprep.subr.mxu0 0.0
        %726 = vmatpush1.xpose.msra.mxu0 0.0
        %727 = vmatprep.subr.mxu0 0.0
        %728 = vmatpush1.xpose.msra.mxu0 0.0
        %729 = vmatprep.subr.mxu0 0.0
        %730 = vmatpush1.xpose.msra.mxu0 0.0
        %731 = vmatprep.subr.mxu0 0.0
        %732 = vmatpush1.xpose.msra.mxu0 0.0
        %733 = vmatprep.subr.mxu0 0.0
        %734 = vmatpush1.xpose.msra.mxu0 0.0
        %735 = vmatprep.subr.mxu0 0.0
        %736 = vmatpush1.xpose.msra.mxu0 0.0
        %737 = vmatprep.subr.mxu0 0.0
        %738 = vmatpush1.xpose.msra.mxu0 0.0
        %739 = vmatprep.subr.mxu0 0.0
        %740 = vmatpush1.xpose.msra.mxu0 0.0
        %741 = vmatprep.subr.mxu0 0.0
        %742 = vmatpush1.xpose.msra.mxu0 0.0
        %743 = vmatprep.subr.mxu0 0.0
        %744 = vmatpush1.xpose.msra.mxu0 0.0
        %745 = vmatprep.subr.mxu0 0.0
        %746 = vmatpush1.xpose.msra.mxu0 0.0
        %747 = vmatprep.mubr.f32.mxu0 0.0
        %748 = vmatmul.mubr.f32.gmra.mrb[0].mxu0 %v678
        %v749 = vpop.f32.mrb[0].mxu0
        %v750 = vadd.f32 0.0, %v749
        %v751 = vpop.f32.mrb[0].mxu0
        %752 = vdwg.mxu0
        %v753 = vsel %vm676, %v750, -inf
        %754 = vmax.xlane.f32.xlu0 %v753
        %v755 = vpop.xlane.xlu0 %754
        %v756 = vsub.f32 %v750, %v755
        %v757 = vmul.f32 %v756, 1.442695
        %v758 = vpow.pop %v757
        %v759 = vsel %vm676, %v758, 0.0
        %760 = vadd.xlane.f32.xlu0 %v759
        %v761 = vpop.xlane.xlu0 %760
        %v762 = vrcp.pop %v761
        %v763 = vmul.f32 1.0, %v762
        %v765 = vsel %vm676, %v758, 0
        %767 = vmatprep.subr.mxu0 0.0
        %768 = vmatpush1.msra.mxu0 %v675
        %769 = vmatprep.subr.mxu0 0.0
        %770 = vmatpush1.msra.mxu0 0.0
        %771 = vmatprep.subr.mxu0 0.0
        %772 = vmatpush1.msra.mxu0 0.0
        %773 = vmatprep.subr.mxu0 0.0
        %774 = vmatpush1.msra.mxu0 0.0
        %775 = vmatprep.subr.mxu0 0.0
        %776 = vmatpush1.msra.mxu0 0.0
        %777 = vmatprep.subr.mxu0 0.0
        %778 = vmatpush1.msra.mxu0 0.0
        %779 = vmatprep.subr.mxu0 0.0
        %780 = vmatpush1.msra.mxu0 0.0
        %781 = vmatprep.subr.mxu0 0.0
        %782 = vmatpush1.msra.mxu0 0.0
        %783 = vmatprep.subr.mxu0 0.0
        %784 = vmatpush1.msra.mxu0 0.0
        %785 = vmatprep.subr.mxu0 0.0
        %786 = vmatpush1.msra.mxu0 0.0
        %787 = vmatprep.subr.mxu0 0.0
        %788 = vmatpush1.msra.mxu0 0.0
        %789 = vmatprep.subr.mxu0 0.0
        %790 = vmatpush1.msra.mxu0 0.0
        %791 = vmatprep.subr.mxu0 0.0
        %792 = vmatpush1.msra.mxu0 0.0
        %793 = vmatprep.subr.mxu0 0.0
        %794 = vmatpush1.msra.mxu0 0.0
        %795 = vmatprep.subr.mxu0 0.0
        %796 = vmatpush1.msra.mxu0 0.0
        %797 = vmatprep.subr.mxu0 0.0
        %798 = vmatpush1.msra.mxu0 0.0
        %799 = vmatprep.subr.mxu0 0.0
        %800 = vmatpush1.msra.mxu0 0.0
        %801 = vmatprep.subr.mxu0 0.0
        %802 = vmatpush1.msra.mxu0 0.0
        %803 = vmatprep.subr.mxu0 0.0
        %804 = vmatpush1.msra.mxu0 0.0
        %805 = vmatprep.subr.mxu0 0.0
        %806 = vmatpush1.msra.mxu0 0.0
        %807 = vmatprep.subr.mxu0 0.0
        %808 = vmatpush1.msra.mxu0 0.0
        %809 = vmatprep.subr.mxu0 0.0
        %810 = vmatpush1.msra.mxu0 0.0
        %811 = vmatprep.subr.mxu0 0.0
        %812 = vmatpush1.msra.mxu0 0.0
        %813 = vmatprep.subr.mxu0 0.0
        %814 = vmatpush1.msra.mxu0 0.0
        %815 = vmatprep.subr.mxu0 0.0
        %816 = vmatpush1.msra.mxu0 0.0
        %817 = vmatprep.subr.mxu0 0.0
        %818 = vmatpush1.msra.mxu0 0.0
        %819 = vmatprep.subr.mxu0 0.0
        %820 = vmatpush1.msra.mxu0 0.0
        %821 = vmatprep.subr.mxu0 0.0
        %822 = vmatpush1.msra.mxu0 0.0
        %823 = vmatprep.subr.mxu0 0.0
        %824 = vmatpush1.msra.mxu0 0.0
        %825 = vmatprep.subr.mxu0 0.0
        %826 = vmatpush1.msra.mxu0 0.0
        %827 = vmatprep.subr.mxu0 0.0
        %828 = vmatpush1.msra.mxu0 0.0
        %829 = vmatprep.subr.mxu0 0.0
        %830 = vmatpush1.msra.mxu0 0.0
        %831 = vmatprep.mubr.f32.mxu0 0.0
        %832 = vmatmul.mubr.f32.gmra.mrb[0].mxu0 %v765
        %v833 = vpop.f32.mrb[0].mxu0
        %v834 = vadd.f32 0.0, %v833
        %v835 = vpop.f32.mrb[0].mxu0
        %836 = vdwg.mxu0
        %v837 = vmul.f32 %v834, %v763
        %838 = vrot.lane.b32.xlu0 %v673, 120
        %v839 = vpop.permute.xlu0 %838
        %840 = vrot.lane.b32.xlu0 %v674, 120
        %v841 = vpop.permute.xlu0 %840
        %v842 = vsel %vm676, %v839, 0
        %v844 = vsel %vm676, %v841, 0
        %846 = vmatprep.subr.mxu0 0.0
        %847 = vmatpush1.xpose.msra.mxu0 %v844
        %848 = vmatprep.subr.mxu0 0.0
        %849 = vmatpush1.xpose.msra.mxu0 0.0
        %850 = vmatprep.subr.mxu0 0.0
        %851 = vmatpush1.xpose.msra.mxu0 0.0
        %852 = vmatprep.subr.mxu0 0.0
        %853 = vmatpush1.xpose.msra.mxu0 0.0
        %854 = vmatprep.subr.mxu0 0.0
        %855 = vmatpush1.xpose.msra.mxu0 0.0
        %856 = vmatprep.subr.mxu0 0.0
        %857 = vmatpush1.xpose.msra.mxu0 0.0
        %858 = vmatprep.subr.mxu0 0.0
        %859 = vmatpush1.xpose.msra.mxu0 0.0
        %860 = vmatprep.subr.mxu0 0.0
        %861 = vmatpush1.xpose.msra.mxu0 0.0
        %862 = vmatprep.subr.mxu0 0.0
        %863 = vmatpush1.xpose.msra.mxu0 0.0
        %864 = vmatprep.subr.mxu0 0.0
        %865 = vmatpush1.xpose.msra.mxu0 0.0
        %866 = vmatprep.subr.mxu0 0.0
        %867 = vmatpush1.xpose.msra.mxu0 0.0
        %868 = vmatprep.subr.mxu0 0.0
        %869 = vmatpush1.xpose.msra.mxu0 0.0
        %870 = vmatprep.subr.mxu0 0.0
        %871 = vmatpush1.xpose.msra.mxu0 0.0
        %872 = vmatprep.subr.mxu0 0.0
        %873 = vmatpush1.xpose.msra.mxu0 0.0
        %874 = vmatprep.subr.mxu0 0.0
        %875 = vmatpush1.xpose.msra.mxu0 0.0
        %876 = vmatprep.subr.mxu0 0.0
        %877 = vmatpush1.xpose.msra.mxu0 0.0
        %878 = vmatprep.subr.mxu0 0.0
        %879 = vmatpush1.xpose.msra.mxu0 0.0
        %880 = vmatprep.subr.mxu0 0.0
        %881 = vmatpush1.xpose.msra.mxu0 0.0
        %882 = vmatprep.subr.mxu0 0.0
        %883 = vmatpush1.xpose.msra.mxu0 0.0
        %884 = vmatprep.subr.mxu0 0.0
        %885 = vmatpush1.xpose.msra.mxu0 0.0
        %886 = vmatprep.subr.mxu0 0.0
        %887 = vmatpush1.xpose.msra.mxu0 0.0
        %888 = vmatprep.subr.mxu0 0.0
        %889 = vmatpush1.xpose.msra.mxu0 0.0
        %890 = vmatprep.subr.mxu0 0.0
        %891 = vmatpush1.xpose.msra.mxu0 0.0
        %892 = vmatprep.subr.mxu0 0.0
        %893 = vmatpush1.xpose.msra.mxu0 0.0
        %894 = vmatprep.subr.mxu0 0.0
        %895 = vmatpush1.xpose.msra.mxu0 0.0
        %896 = vmatprep.subr.mxu0 0.0
        %897 = vmatpush1.xpose.msra.mxu0 0.0
        %898 = vmatprep.subr.mxu0 0.0
        %899 = vmatpush1.xpose.msra.mxu0 0.0
        %900 = vmatprep.subr.mxu0 0.0
        %901 = vmatpush1.xpose.msra.mxu0 0.0
        %902 = vmatprep.subr.mxu0 0.0
        %903 = vmatpush1.xpose.msra.mxu0 0.0
        %904 = vmatprep.subr.mxu0 0.0
        %905 = vmatpush1.xpose.msra.mxu0 0.0
        %906 = vmatprep.subr.mxu0 0.0
        %907 = vmatpush1.xpose.msra.mxu0 0.0
        %908 = vmatprep.subr.mxu0 0.0
        %909 = vmatpush1.xpose.msra.mxu0 0.0
        %910 = vmatprep.mubr.f32.mxu0 0.0
        %911 = vmatmul.mubr.f32.gmra.mrb[0].mxu0 %v842
        %v912 = vpop.f32.mrb[0].mxu0
        %v913 = vadd.f32 0.0, %v912
        %v914 = vpop.f32.mrb[0].mxu0
        %915 = vdwg.mxu0
        %v916 = vsel %vm676, %v913, -inf
        %917 = vmax.xlane.f32.xlu0 %v916
        %v918 = vpop.xlane.xlu0 %917
        %v919 = vsub.f32 %v913, %v918
        %v920 = vmul.f32 %v919, 1.442695
        %v921 = vpow.pop %v920
        %v922 = vsel %vm676, %v921, 0.0
        %923 = vadd.xlane.f32.xlu0 %v922
        %v924 = vpop.xlane.xlu0 %923
        %v925 = vrcp.pop %v924
        %v926 = vmul.f32 1.0, %v925
        %928 = vrot.lane.b32.xlu0 %v675, 120
        %v929 = vpop.permute.xlu0 %928
        %v932 = vsel %vm676, %v921, 0
        %934 = vmatprep.subr.mxu0 0.0
        %935 = vmatpush1.msra.mxu0 %v929
        %936 = vmatprep.subr.mxu0 0.0
        %937 = vmatpush1.msra.mxu0 0.0
        %938 = vmatprep.subr.mxu0 0.0
        %939 = vmatpush1.msra.mxu0 0.0
        %940 = vmatprep.subr.mxu0 0.0
        %941 = vmatpush1.msra.mxu0 0.0
        %942 = vmatprep.subr.mxu0 0.0
        %943 = vmatpush1.msra.mxu0 0.0
        %944 = vmatprep.subr.mxu0 0.0
        %945 = vmatpush1.msra.mxu0 0.0
        %946 = vmatprep.subr.mxu0 0.0
        %947 = vmatpush1.msra.mxu0 0.0
        %948 = vmatprep.subr.mxu0 0.0
        %949 = vmatpush1.msra.mxu0 0.0
        %950 = vmatprep.subr.mxu0 0.0
        %951 = vmatpush1.msra.mxu0 0.0
        %952 = vmatprep.subr.mxu0 0.0
        %953 = vmatpush1.msra.mxu0 0.0
        %954 = vmatprep.subr.mxu0 0.0
        %955 = vmatpush1.msra.mxu0 0.0
        %956 = vmatprep.subr.mxu0 0.0
        %957 = vmatpush1.msra.mxu0 0.0
        %958 = vmatprep.subr.mxu0 0.0
        %959 = vmatpush1.msra.mxu0 0.0
        %960 = vmatprep.subr.mxu0 0.0
        %961 = vmatpush1.msra.mxu0 0.0
        %962 = vmatprep.subr.mxu0 0.0
        %963 = vmatpush1.msra.mxu0 0.0
        %964 = vmatprep.subr.mxu0 0.0
        %965 = vmatpush1.msra.mxu0 0.0
        %966 = vmatprep.subr.mxu0 0.0
        %967 = vmatpush1.msra.mxu0 0.0
        %968 = vmatprep.subr.mxu0 0.0
        %969 = vmatpush1.msra.mxu0 0.0
        %970 = vmatprep.subr.mxu0 0.0
        %971 = vmatpush1.msra.mxu0 0.0
        %972 = vmatprep.subr.mxu0 0.0
        %973 = vmatpush1.msra.mxu0 0.0
        %974 = vmatprep.subr.mxu0 0.0
        %975 = vmatpush1.msra.mxu0 0.0
        %976 = vmatprep.subr.mxu0 0.0
        %977 = vmatpush1.msra.mxu0 0.0
        %978 = vmatprep.subr.mxu0 0.0
        %979 = vmatpush1.msra.mxu0 0.0
        %980 = vmatprep.subr.mxu0 0.0
        %981 = vmatpush1.msra.mxu0 0.0
        %982 = vmatprep.subr.mxu0 0.0
        %983 = vmatpush1.msra.mxu0 0.0
        %984 = vmatprep.subr.mxu0 0.0
        %985 = vmatpush1.msra.mxu0 0.0
        %986 = vmatprep.subr.mxu0 0.0
        %987 = vmatpush1.msra.mxu0 0.0
        %988 = vmatprep.subr.mxu0 0.0
        %989 = vmatpush1.msra.mxu0 0.0
        %990 = vmatprep.subr.mxu0 0.0
        %991 = vmatpush1.msra.mxu0 0.0
        %992 = vmatprep.subr.mxu0 0.0
        %993 = vmatpush1.msra.mxu0 0.0
        %994 = vmatprep.subr.mxu0 0.0
        %995 = vmatpush1.msra.mxu0 0.0
        %996 = vmatprep.subr.mxu0 0.0
        %997 = vmatpush1.msra.mxu0 0.0
        %998 = vmatprep.mubr.f32.mxu0 0.0
        %999 = vmatmul.mubr.f32.gmra.mrb[0].mxu0 %v932
        %v1000 = vpop.f32.mrb[0].mxu0
        %v1001 = vadd.f32 0.0, %v1000
        %v1002 = vpop.f32.mrb[0].mxu0
        %1003 = vdwg.mxu0
        %v1004 = vmul.f32 %v1001, %v926
        %1005 = vrot.lane.b32.xlu0 %v673, 112
        %v1006 = vpop.permute.xlu0 %1005
        %1007 = vrot.lane.b32.xlu0 %v674, 112
        %v1008 = vpop.permute.xlu0 %1007
        %v1009 = vsel %vm676, %v1006, 0
        %v1011 = vsel %vm676, %v1008, 0
        %1013 = vmatprep.subr.mxu0 0.0
        %1014 = vmatpush1.xpose.msra.mxu0 %v1011
        %1015 = vmatprep.subr.mxu0 0.0
        %1016 = vmatpush1.xpose.msra.mxu0 0.0
        %1017 = vmatprep.subr.mxu0 0.0
        %1018 = vmatpush1.xpose.msra.mxu0 0.0
        %1019 = vmatprep.subr.mxu0 0.0
        %1020 = vmatpush1.xpose.msra.mxu0 0.0
        %1021 = vmatprep.subr.mxu0 0.0
        %1022 = vmatpush1.xpose.msra.mxu0 0.0
        %1023 = vmatprep.subr.mxu0 0.0
        %1024 = vmatpush1.xpose.msra.mxu0 0.0
        %1025 = vmatprep.subr.mxu0 0.0
        %1026 = vmatpush1.xpose.msra.mxu0 0.0
        %1027 = vmatprep.subr.mxu0 0.0
        %1028 = vmatpush1.xpose.msra.mxu0 0.0
        %1029 = vmatprep.subr.mxu0 0.0
        %1030 = vmatpush1.xpose.msra.mxu0 0.0
        %1031 = vmatprep.subr.mxu0 0.0
        %1032 = vmatpush1.xpose.msra.mxu0 0.0
        %1033 = vmatprep.subr.mxu0 0.0
        %1034 = vmatpush1.xpose.msra.mxu0 0.0
        %1035 = vmatprep.subr.mxu0 0.0
        %1036 = vmatpush1.xpose.msra.mxu0 0.0
        %1037 = vmatprep.subr.mxu0 0.0
        %1038 = vmatpush1.xpose.msra.mxu0 0.0
        %1039 = vmatprep.subr.mxu0 0.0
        %1040 = vmatpush1.xpose.msra.mxu0 0.0
        %1041 = vmatprep.subr.mxu0 0.0
        %1042 = vmatpush1.xpose.msra.mxu0 0.0
        %1043 = vmatprep.subr.mxu0 0.0
        %1044 = vmatpush1.xpose.msra.mxu0 0.0
        %1045 = vmatprep.subr.mxu0 0.0
        %1046 = vmatpush1.xpose.msra.mxu0 0.0
        %1047 = vmatprep.subr.mxu0 0.0
        %1048 = vmatpush1.xpose.msra.mxu0 0.0
        %1049 = vmatprep.subr.mxu0 0.0
        %1050 = vmatpush1.xpose.msra.mxu0 0.0
        %1051 = vmatprep.subr.mxu0 0.0
        %1052 = vmatpush1.xpose.msra.mxu0 0.0
        %1053 = vmatprep.subr.mxu0 0.0
        %1054 = vmatpush1.xpose.msra.mxu0 0.0
        %1055 = vmatprep.subr.mxu0 0.0
        %1056 = vmatpush1.xpose.msra.mxu0 0.0
        %1057 = vmatprep.subr.mxu0 0.0
        %1058 = vmatpush1.xpose.msra.mxu0 0.0
        %1059 = vmatprep.subr.mxu0 0.0
        %1060 = vmatpush1.xpose.msra.mxu0 0.0
        %1061 = vmatprep.subr.mxu0 0.0
        %1062 = vmatpush1.xpose.msra.mxu0 0.0
        %1063 = vmatprep.subr.mxu0 0.0
        %1064 = vmatpush1.xpose.msra.mxu0 0.0
        %1065 = vmatprep.subr.mxu0 0.0
        %1066 = vmatpush1.xpose.msra.mxu0 0.0
        %1067 = vmatprep.subr.mxu0 0.0
        %1068 = vmatpush1.xpose.msra.mxu0 0.0
        %1069 = vmatprep.subr.mxu0 0.0
        %1070 = vmatpush1.xpose.msra.mxu0 0.0
        %1071 = vmatprep.subr.mxu0 0.0
        %1072 = vmatpush1.xpose.msra.mxu0 0.0
        %1073 = vmatprep.subr.mxu0 0.0
        %1074 = vmatpush1.xpose.msra.mxu0 0.0
        %1075 = vmatprep.subr.mxu0 0.0
        %1076 = vmatpush1.xpose.msra.mxu0 0.0
        %1077 = vmatprep.mubr.f32.mxu0 0.0
        %1078 = vmatmul.mubr.f32.gmra.mrb[0].mxu0 %v1009
        %v1079 = vpop.f32.mrb[0].mxu0
        %v1080 = vadd.f32 0.0, %v1079
        %v1081 = vpop.f32.mrb[0].mxu0
        %1082 = vdwg.mxu0
        %v1083 = vsel %vm676, %v1080, -inf
        %1084 = vmax.xlane.f32.xlu0 %v1083
        %v1085 = vpop.xlane.xlu0 %1084
        %v1086 = vsub.f32 %v1080, %v1085
        %v1087 = vmul.f32 %v1086, 1.442695
        %v1088 = vpow.pop %v1087
        %v1089 = vsel %vm676, %v1088, 0.0
        %1090 = vadd.xlane.f32.xlu0 %v1089
        %v1091 = vpop.xlane.xlu0 %1090
        %v1092 = vrcp.pop %v1091
        %v1093 = vmul.f32 1.0, %v1092
        %1094 = vrot.lane.b32.xlu0 %v675, 112
        %v1095 = vpop.permute.xlu0 %1094
        %v1098 = vsel %vm676, %v1088, 0
        %1100 = vmatprep.subr.mxu0 0.0
        %1101 = vmatpush1.msra.mxu0 %v1095
        %1102 = vmatprep.subr.mxu0 0.0
        %1103 = vmatpush1.msra.mxu0 0.0
        %1104 = vmatprep.subr.mxu0 0.0
        %1105 = vmatpush1.msra.mxu0 0.0
        %1106 = vmatprep.subr.mxu0 0.0
        %1107 = vmatpush1.msra.mxu0 0.0
        %1108 = vmatprep.subr.mxu0 0.0
        %1109 = vmatpush1.msra.mxu0 0.0
        %1110 = vmatprep.subr.mxu0 0.0
        %1111 = vmatpush1.msra.mxu0 0.0
        %1112 = vmatprep.subr.mxu0 0.0
        %1113 = vmatpush1.msra.mxu0 0.0
        %1114 = vmatprep.subr.mxu0 0.0
        %1115 = vmatpush1.msra.mxu0 0.0
        %1116 = vmatprep.subr.mxu0 0.0
        %1117 = vmatpush1.msra.mxu0 0.0
        %1118 = vmatprep.subr.mxu0 0.0
        %1119 = vmatpush1.msra.mxu0 0.0
        %1120 = vmatprep.subr.mxu0 0.0
        %1121 = vmatpush1.msra.mxu0 0.0
        %1122 = vmatprep.subr.mxu0 0.0
        %1123 = vmatpush1.msra.mxu0 0.0
        %1124 = vmatprep.subr.mxu0 0.0
        %1125 = vmatpush1.msra.mxu0 0.0
        %1126 = vmatprep.subr.mxu0 0.0
        %1127 = vmatpush1.msra.mxu0 0.0
        %1128 = vmatprep.subr.mxu0 0.0
        %1129 = vmatpush1.msra.mxu0 0.0
        %1130 = vmatprep.subr.mxu0 0.0
        %1131 = vmatpush1.msra.mxu0 0.0
        %1132 = vmatprep.subr.mxu0 0.0
        %1133 = vmatpush1.msra.mxu0 0.0
        %1134 = vmatprep.subr.mxu0 0.0
        %1135 = vmatpush1.msra.mxu0 0.0
        %1136 = vmatprep.subr.mxu0 0.0
        %1137 = vmatpush1.msra.mxu0 0.0
        %1138 = vmatprep.subr.mxu0 0.0
        %1139 = vmatpush1.msra.mxu0 0.0
        %1140 = vmatprep.subr.mxu0 0.0
        %1141 = vmatpush1.msra.mxu0 0.0
        %1142 = vmatprep.subr.mxu0 0.0
        %1143 = vmatpush1.msra.mxu0 0.0
        %1144 = vmatprep.subr.mxu0 0.0
        %1145 = vmatpush1.msra.mxu0 0.0
        %1146 = vmatprep.subr.mxu0 0.0
        %1147 = vmatpush1.msra.mxu0 0.0
        %1148 = vmatprep.subr.mxu0 0.0
        %1149 = vmatpush1.msra.mxu0 0.0
        %1150 = vmatprep.subr.mxu0 0.0
        %1151 = vmatpush1.msra.mxu0 0.0
        %1152 = vmatprep.subr.mxu0 0.0
        %1153 = vmatpush1.msra.mxu0 0.0
        %1154 = vmatprep.subr.mxu0 0.0
        %1155 = vmatpush1.msra.mxu0 0.0
        %1156 = vmatprep.subr.mxu0 0.0
        %1157 = vmatpush1.msra.mxu0 0.0
        %1158 = vmatprep.subr.mxu0 0.0
        %1159 = vmatpush1.msra.mxu0 0.0
        %1160 = vmatprep.subr.mxu0 0.0
        %1161 = vmatpush1.msra.mxu0 0.0
        %1162 = vmatprep.subr.mxu0 0.0
        %1163 = vmatpush1.msra.mxu0 0.0
        %1164 = vmatprep.mubr.f32.mxu0 0.0
        %1165 = vmatmul.mubr.f32.gmra.mrb[0].mxu0 %v1098
        %v1166 = vpop.f32.mrb[0].mxu0
        %v1167 = vadd.f32 0.0, %v1166
        %v1168 = vpop.f32.mrb[0].mxu0
        %1169 = vdwg.mxu0
        %v1170 = vmul.f32 %v1167, %v1093
        %1171 = vrot.lane.b32.xlu0 %v673, 104
        %v1172 = vpop.permute.xlu0 %1171
        %1173 = vrot.lane.b32.xlu0 %v674, 104
        %v1174 = vpop.permute.xlu0 %1173
        %v1175 = vsel %vm676, %v1172, 0
        %v1177 = vsel %vm676, %v1174, 0
        %1179 = vmatprep.subr.mxu0 0.0
        %1180 = vmatpush1.xpose.msra.mxu0 %v1177
        %1181 = vmatprep.subr.mxu0 0.0
        %1182 = vmatpush1.xpose.msra.mxu0 0.0
        %1183 = vmatprep.subr.mxu0 0.0
        %1184 = vmatpush1.xpose.msra.mxu0 0.0
        %1185 = vmatprep.subr.mxu0 0.0
        %1186 = vmatpush1.xpose.msra.mxu0 0.0
        %1187 = vmatprep.subr.mxu0 0.0
        %1188 = vmatpush1.xpose.msra.mxu0 0.0
        %1189 = vmatprep.subr.mxu0 0.0
        %1190 = vmatpush1.xpose.msra.mxu0 0.0
        %1191 = vmatprep.subr.mxu0 0.0
        %1192 = vmatpush1.xpose.msra.mxu0 0.0
        %1193 = vmatprep.subr.mxu0 0.0
        %1194 = vmatpush1.xpose.msra.mxu0 0.0
        %1195 = vmatprep.subr.mxu0 0.0
        %1196 = vmatpush1.xpose.msra.mxu0 0.0
        %1197 = vmatprep.subr.mxu0 0.0
        %1198 = vmatpush1.xpose.msra.mxu0 0.0
        %1199 = vmatprep.subr.mxu0 0.0
        %1200 = vmatpush1.xpose.msra.mxu0 0.0
        %1201 = vmatprep.subr.mxu0 0.0
        %1202 = vmatpush1.xpose.msra.mxu0 0.0
        %1203 = vmatprep.subr.mxu0 0.0
        %1204 = vmatpush1.xpose.msra.mxu0 0.0
        %1205 = vmatprep.subr.mxu0 0.0
        %1206 = vmatpush1.xpose.msra.mxu0 0.0
        %1207 = vmatprep.subr.mxu0 0.0
        %1208 = vmatpush1.xpose.msra.mxu0 0.0
        %1209 = vmatprep.subr.mxu0 0.0
        %1210 = vmatpush1.xpose.msra.mxu0 0.0
        %1211 = vmatprep.subr.mxu0 0.0
        %1212 = vmatpush1.xpose.msra.mxu0 0.0
        %1213 = vmatprep.subr.mxu0 0.0
        %1214 = vmatpush1.xpose.msra.mxu0 0.0
        %1215 = vmatprep.subr.mxu0 0.0
        %1216 = vmatpush1.xpose.msra.mxu0 0.0
        %1217 = vmatprep.subr.mxu0 0.0
        %1218 = vmatpush1.xpose.msra.mxu0 0.0
        %1219 = vmatprep.subr.mxu0 0.0
        %1220 = vmatpush1.xpose.msra.mxu0 0.0
        %1221 = vmatprep.subr.mxu0 0.0
        %1222 = vmatpush1.xpose.msra.mxu0 0.0
        %1223 = vmatprep.subr.mxu0 0.0
        %1224 = vmatpush1.xpose.msra.mxu0 0.0
        %1225 = vmatprep.subr.mxu0 0.0
        %1226 = vmatpush1.xpose.msra.mxu0 0.0
        %1227 = vmatprep.subr.mxu0 0.0
        %1228 = vmatpush1.xpose.msra.mxu0 0.0
        %1229 = vmatprep.subr.mxu0 0.0
        %1230 = vmatpush1.xpose.msra.mxu0 0.0
        %1231 = vmatprep.subr.mxu0 0.0
        %1232 = vmatpush1.xpose.msra.mxu0 0.0
        %1233 = vmatprep.subr.mxu0 0.0
        %1234 = vmatpush1.xpose.msra.mxu0 0.0
        %1235 = vmatprep.subr.mxu0 0.0
        %1236 = vmatpush1.xpose.msra.mxu0 0.0
        %1237 = vmatprep.subr.mxu0 0.0
        %1238 = vmatpush1.xpose.msra.mxu0 0.0
        %1239 = vmatprep.subr.mxu0 0.0
        %1240 = vmatpush1.xpose.msra.mxu0 0.0
        %1241 = vmatprep.subr.mxu0 0.0
        %1242 = vmatpush1.xpose.msra.mxu0 0.0
        %1243 = vmatprep.mubr.f32.mxu0 0.0
        %1244 = vmatmul.mubr.f32.gmra.mrb[0].mxu0 %v1175
        %v1245 = vpop.f32.mrb[0].mxu0
        %v1246 = vadd.f32 0.0, %v1245
        %v1247 = vpop.f32.mrb[0].mxu0
        %1248 = vdwg.mxu0
        %v1249 = vsel %vm676, %v1246, -inf
        %1250 = vmax.xlane.f32.xlu0 %v1249
        %v1251 = vpop.xlane.xlu0 %1250
        %v1252 = vsub.f32 %v1246, %v1251
        %v1253 = vmul.f32 %v1252, 1.442695
        %v1254 = vpow.pop %v1253
        %v1255 = vsel %vm676, %v1254, 0.0
        %1256 = vadd.xlane.f32.xlu0 %v1255
        %v1257 = vpop.xlane.xlu0 %1256
        %v1258 = vrcp.pop %v1257
        %v1259 = vmul.f32 1.0, %v1258
        %1260 = vrot.lane.b32.xlu0 %v675, 104
        %v1261 = vpop.permute.xlu0 %1260
        %v1264 = vsel %vm676, %v1254, 0
        %1266 = vmatprep.subr.mxu0 0.0
        %1267 = vmatpush1.msra.mxu0 %v1261
        %1268 = vmatprep.subr.mxu0 0.0
        %1269 = vmatpush1.msra.mxu0 0.0
        %1270 = vmatprep.subr.mxu0 0.0
        %1271 = vmatpush1.msra.mxu0 0.0
        %1272 = vmatprep.subr.mxu0 0.0
        %1273 = vmatpush1.msra.mxu0 0.0
        %1274 = vmatprep.subr.mxu0 0.0
        %1275 = vmatpush1.msra.mxu0 0.0
        %1276 = vmatprep.subr.mxu0 0.0
        %1277 = vmatpush1.msra.mxu0 0.0
        %1278 = vmatprep.subr.mxu0 0.0
        %1279 = vmatpush1.msra.mxu0 0.0
        %1280 = vmatprep.subr.mxu0 0.0
        %1281 = vmatpush1.msra.mxu0 0.0
        %1282 = vmatprep.subr.mxu0 0.0
        %1283 = vmatpush1.msra.mxu0 0.0
        %1284 = vmatprep.subr.mxu0 0.0
        %1285 = vmatpush1.msra.mxu0 0.0
        %1286 = vmatprep.subr.mxu0 0.0
        %1287 = vmatpush1.msra.mxu0 0.0
        %1288 = vmatprep.subr.mxu0 0.0
        %1289 = vmatpush1.msra.mxu0 0.0
        %1290 = vmatprep.subr.mxu0 0.0
        %1291 = vmatpush1.msra.mxu0 0.0
        %1292 = vmatprep.subr.mxu0 0.0
        %1293 = vmatpush1.msra.mxu0 0.0
        %1294 = vmatprep.subr.mxu0 0.0
        %1295 = vmatpush1.msra.mxu0 0.0
        %1296 = vmatprep.subr.mxu0 0.0
        %1297 = vmatpush1.msra.mxu0 0.0
        %1298 = vmatprep.subr.mxu0 0.0
        %1299 = vmatpush1.msra.mxu0 0.0
        %1300 = vmatprep.subr.mxu0 0.0
        %1301 = vmatpush1.msra.mxu0 0.0
        %1302 = vmatprep.subr.mxu0 0.0
        %1303 = vmatpush1.msra.mxu0 0.0
        %1304 = vmatprep.subr.mxu0 0.0
        %1305 = vmatpush1.msra.mxu0 0.0
        %1306 = vmatprep.subr.mxu0 0.0
        %1307 = vmatpush1.msra.mxu0 0.0
        %1308 = vmatprep.subr.mxu0 0.0
        %1309 = vmatpush1.msra.mxu0 0.0
        %1310 = vmatprep.subr.mxu0 0.0
        %1311 = vmatpush1.msra.mxu0 0.0
        %1312 = vmatprep.subr.mxu0 0.0
        %1313 = vmatpush1.msra.mxu0 0.0
        %1314 = vmatprep.subr.mxu0 0.0
        %1315 = vmatpush1.msra.mxu0 0.0
        %1316 = vmatprep.subr.mxu0 0.0
        %1317 = vmatpush1.msra.mxu0 0.0
        %1318 = vmatprep.subr.mxu0 0.0
        %1319 = vmatpush1.msra.mxu0 0.0
        %1320 = vmatprep.subr.mxu0 0.0
        %1321 = vmatpush1.msra.mxu0 0.0
        %1322 = vmatprep.subr.mxu0 0.0
        %1323 = vmatpush1.msra.mxu0 0.0
        %1324 = vmatprep.subr.mxu0 0.0
        %1325 = vmatpush1.msra.mxu0 0.0
        %1326 = vmatprep.subr.mxu0 0.0
        %1327 = vmatpush1.msra.mxu0 0.0
        %1328 = vmatprep.subr.mxu0 0.0
        %1329 = vmatpush1.msra.mxu0 0.0
        %1330 = vmatprep.mubr.f32.mxu0 0.0
        %1331 = vmatmul.mubr.f32.gmra.mrb[0].mxu0 %v1264
        %v1332 = vpop.f32.mrb[0].mxu0
        %v1333 = vadd.f32 0.0, %v1332
        %v1334 = vpop.f32.mrb[0].mxu0
        %1335 = vdwg.mxu0
        %v1336 = vmul.f32 %v1333, %v1259
        %1338 = vrot.lane.b32.xlu0 %v1004, 8
        %v1339 = vpop.permute.xlu0 %1338
        %1342 = vrot.lane.b32.xlu0 %v1170, 16
        %v1343 = vpop.permute.xlu0 %1342
        %1346 = vrot.lane.b32.xlu0 %v1336, 24
        %v1347 = vpop.permute.xlu0 %1346
        %v1349 = vsel %vm676, %v837, %v1339
        %vm1350 = vcmask 130048
        %v1351 = vsel %vm1350, %v1349, %v1343
        %vm1352 = vcmask 195584
        %v1353 = vsel %vm1352, %v1351, %v1347
        %v1354 = vld [vmem:[#allocation10] sm:$0xff]
        %v1355 = vld [vmem:[#allocation10 + $0x8] sm:$0xff]
        %v1356 = vld [vmem:[#allocation10 + $0x10] sm:$0xff]
        %v1357 = vld [vmem:[#allocation10 + $0x18] sm:$0xff]
        %v1358 = vld [vmem:[%s9] sm:$0x1]
        %v1360 = vlaneseq
        %v1361 = vshrl.u32 %v1360, 7
        %v1362 = vsub.s32 0, %v1361
        %v1363 = vrot.slane %v1358, %v1362
        %v1366 = vsel %vm583, %v1353, 0
        %1368 = vmatprep.subr.mxu0 0.0
        %1369 = vmatpush1.msra.mxu0 %v1354
        %1370 = vmatprep.subr.mxu0 0.0
        %1371 = vmatpush1.msra.mxu0 %v1355
        %1372 = vmatprep.subr.mxu0 0.0
        %1373 = vmatpush1.msra.mxu0 %v1356
        %1374 = vmatprep.subr.mxu0 0.0
        %1375 = vmatpush1.msra.mxu0 %v1357
        %1376 = vmatprep.subr.mxu0 0.0
        %1377 = vmatpush1.msra.mxu0 0.0
        %1378 = vmatprep.subr.mxu0 0.0
        %1379 = vmatpush1.msra.mxu0 0.0
        %1380 = vmatprep.subr.mxu0 0.0
        %1381 = vmatpush1.msra.mxu0 0.0
        %1382 = vmatprep.subr.mxu0 0.0
        %1383 = vmatpush1.msra.mxu0 0.0
        %1384 = vmatprep.subr.mxu0 0.0
        %1385 = vmatpush1.msra.mxu0 0.0
        %1386 = vmatprep.subr.mxu0 0.0
        %1387 = vmatpush1.msra.mxu0 0.0
        %1388 = vmatprep.subr.mxu0 0.0
        %1389 = vmatpush1.msra.mxu0 0.0
        %1390 = vmatprep.subr.mxu0 0.0
        %1391 = vmatpush1.msra.mxu0 0.0
        %1392 = vmatprep.subr.mxu0 0.0
        %1393 = vmatpush1.msra.mxu0 0.0
        %1394 = vmatprep.subr.mxu0 0.0
        %1395 = vmatpush1.msra.mxu0 0.0
        %1396 = vmatprep.subr.mxu0 0.0
        %1397 = vmatpush1.msra.mxu0 0.0
        %1398 = vmatprep.subr.mxu0 0.0
        %1399 = vmatpush1.msra.mxu0 0.0
        %1400 = vmatprep.subr.mxu0 0.0
        %1401 = vmatpush1.msra.mxu0 0.0
        %1402 = vmatprep.subr.mxu0 0.0
        %1403 = vmatpush1.msra.mxu0 0.0
        %1404 = vmatprep.subr.mxu0 0.0
        %1405 = vmatpush1.msra.mxu0 0.0
        %1406 = vmatprep.subr.mxu0 0.0
        %1407 = vmatpush1.msra.mxu0 0.0
        %1408 = vmatprep.subr.mxu0 0.0
        %1409 = vmatpush1.msra.mxu0 0.0
        %1410 = vmatprep.subr.mxu0 0.0
        %1411 = vmatpush1.msra.mxu0 0.0
        %1412 = vmatprep.subr.mxu0 0.0
        %1413 = vmatpush1.msra.mxu0 0.0
        %1414 = vmatprep.subr.mxu0 0.0
        %1415 = vmatpush1.msra.mxu0 0.0
        %1416 = vmatprep.subr.mxu0 0.0
        %1417 = vmatpush1.msra.mxu0 0.0
        %1418 = vmatprep.subr.mxu0 0.0
        %1419 = vmatpush1.msra.mxu0 0.0
        %1420 = vmatprep.subr.mxu0 0.0
        %1421 = vmatpush1.msra.mxu0 0.0
        %1422 = vmatprep.subr.mxu0 0.0
        %1423 = vmatpush1.msra.mxu0 0.0
        %1424 = vmatprep.subr.mxu0 0.0
        %1425 = vmatpush1.msra.mxu0 0.0
        %1426 = vmatprep.subr.mxu0 0.0
        %1427 = vmatpush1.msra.mxu0 0.0
        %1428 = vmatprep.subr.mxu0 0.0
        %1429 = vmatpush1.msra.mxu0 0.0
        %1430 = vmatprep.subr.mxu0 0.0
        %1431 = vmatpush1.msra.mxu0 0.0
        %1432 = vmatprep.mubr.f32.mxu0 0.0
        %1433 = vmatmul.mubr.f32.gmra.mrb[0].mxu0 %v1366
        %v1434 = vpop.f32.mrb[0].mxu0
        %v1435 = vadd.f32 %v1363, %v1434
        %v1436 = vpop.f32.mrb[0].mxu0
        %1437 = vdwg.mxu0
        %1438 = vst.msk [vmem:[%s458] sm:$0xff] %vm583, %v1435
        %s1439 = sand.u32 %s275, 1
        %s1440 = scalar_lea.sflag [#allocation6], %s1439
        %s1441 = sand.u32 %s275, 1
        %s1442 = smul.addr %s1441, 8
        %s1443 = scalar_lea.vmem [#allocation12], %s1442
        // Predicated region
        $region81: #{tpu_custom_call.1} parent=59 // pred_check
          %p1444 = pneg %p285
        $region82: #{tpu_custom_call.1} parent=59 // pred_check_branch
          %1446 = sbr.rel (%p1444) target = $region84
        $region83: #{tpu_custom_call.1} parent=59 // pred_region
          %s1448 = ssub.s32 128, 128
          %1449 = vsyncadd %s1440, %s1448
          %s1450 = smul.addr %s35, 2
          %s1451 = sadd.s32 %s36, %s1450
          %s1452 = smul.addr %s1451, 128
          %s1453 = scalar_lea.hbm %s10, %s1452
          %s1455 = sshll.u32 %s1443, 4
          %s1456 = int_to_ptr.vmem [resolvable:$true] %s1455
          %1458 = dma.vmem_to_hbm [thread:$0]  %s1456, 128, %s1453, %s1440
        $region84: #{tpu_custom_call.1} parent=59 // pred_fallthru
          _
      $region60: #{tpu_custom_call.1} parent=5 // pred_fallthru
        _
      %p1459 = scmp.le.s32.totalorder 2, %s26
      // Predicated region
      $region85: #{tpu_custom_call.1} parent=5 // pred_check
        %p1460 = pneg %p1459
      $region86: #{tpu_custom_call.1} parent=5 // pred_check_branch
        %1462 = sbr.rel (%p1460) target = $region88
      $region87: #{tpu_custom_call.1} parent=5 // pred_region
        %s1463 = ssub.s32 %s26, 2
        // Predicated region
        $region89: #{tpu_custom_call.1} parent=87 // pred_check
          %p1464 = pneg %p291
        $region90: #{tpu_custom_call.1} parent=87 // pred_check_branch
          %1466 = sbr.rel (%p1464) target = $region92
        $region91: #{tpu_custom_call.1} parent=87 // pred_region
          %s1467 = sand.u32 %s276, 1
          %s1468 = scalar_lea.sflag [#allocation6], %s1467
          %s1469 = sand.u32 %s276, 1
          %s1470 = smul.addr %s1469, 8
          %s1471 = scalar_lea.vmem [#allocation12], %s1470
          %1472 = dma.done %s1468, 128
        $region92: #{tpu_custom_call.1} parent=87 // pred_fallthru
          _
      $region88: #{tpu_custom_call.1} parent=5 // pred_fallthru
        _
    $region6: #{tpu_custom_call.1} parent=1 // loop_footer
      %s30 = sadd.s32 1, %s26
    $region7: #{tpu_custom_call.1} parent=1 // loop_footer_branch
      %25 = sbr.rel target = $region3
    $region8: #{tpu_custom_call.1} parent=1 // loop_exit
      _
    %1473 = vsyncpa [#allocation5], 1
    %s1474 = scalar_lea.sflag [#allocation5], 1
    %1475 = vsyncpa %s1474, 1
    %1476 = vsyncpa [#allocation8], 1
    %s1477 = scalar_lea.sflag [#allocation8], 1
    %1478 = vsyncpa %s1477, 1
    %1479 = vsyncpa [#allocation11], 1
    %1480 = vsyncpa [#allocation6], 1
    %s1481 = scalar_lea.sflag [#allocation6], 1
    %1482 = vsyncpa %s1481, 1

</llo_original>
